<compile_context>
chip_gen: v7x
topology: tpu7x:2x2x1
jax: 0.10.0
libtpu: 0.0.40
codegen_flags: <defaults>
</compile_context>

<pallas_src>
import functools

import jax
import jax.numpy as jnp
from jax import lax
from jax.experimental import pallas as pl
from jax.experimental.pallas import tpu as pltpu

_EPS = 1e-5
_INV_SQRT2 = 0.7071067811865476


def _erf(x):
    # Abramowitz & Stegun 7.1.26 rational approximation (max abs err ~1.5e-7).
    # Uses only exp / mul / add / select, which all lower cleanly in Mosaic
    # (no dependence on an erf primitive inside the kernel).
    p = 0.3275911
    a1, a2, a3, a4, a5 = (0.254829592, -0.284496736, 1.421413741,
                          -1.453152027, 1.061405429)
    ax = jnp.abs(x)
    t = 1.0 / (1.0 + p * ax)
    poly = ((((a5 * t + a4) * t + a3) * t + a2) * t + a1) * t
    y = 1.0 - poly * jnp.exp(-ax * ax)
    return jnp.where(x >= 0.0, y, -y)


def _gelu_exact(x):
    # Matches torch.nn.GELU() default (erf formulation, not tanh approx).
    return 0.5 * x * (1.0 + _erf(x * _INV_SQRT2))


def _convblock_kernel(x_ref, wcc_ref, bcc_ref, wl_ref, bl_ref, o_ref,
                      *, h, w, c_out):
    """Fused Convblock for one batch element.

    x_ref  : (1, C_in, LP)       zero-padded image, flattened row-major with
                                  row pitch WP = W + 2, LP = (H + 3) * WP
    wcc_ref: (9, 2*C_out, C_in)  per-tap 3x3 weights (conv stacked over gate)
    bcc_ref: (2*C_out, 1)        conv / gate biases
    wl_ref : (C_out, C_out)      1x1 "linear" conv weight
    bl_ref : (C_out, 1)          1x1 conv bias
    o_ref  : (1, C_out, LOUT)    LOUT = H * WP (wrap columns sliced off outside)
    """
    wp = w + 2
    lout = h * wp

    xp = x_ref[0].astype(jnp.float32)                       # (C_in, LP)

    # Both 3x3 convs (conv + gate) as 9 lane-shifted matmuls on the MXU.
    acc = jnp.zeros((2 * c_out, lout), jnp.float32)
    for tap in range(9):
        dy, dx = divmod(tap, 3)
        off = dy * wp + dx
        xs = xp[:, off:off + lout]                          # (C_in, LOUT)
        acc = acc + jnp.dot(wcc_ref[tap].astype(jnp.float32), xs,
                            preferred_element_type=jnp.float32)
    acc = acc + bcc_ref[...].astype(jnp.float32)

    x1 = acc[:c_out]                                        # conv branch
    x2 = acc[c_out:]                                        # gate branch
    prod = x1 * _gelu_exact(x2)                             # (C_out, LOUT)

    # InstanceNorm2d statistics over the H*W *valid* lanes only (single fused
    # sum / sum-of-squares pass; the two wrap columns per row are masked out).
    lane = lax.broadcasted_iota(jnp.int32, (1, lout), 1)
    valid = (lane % wp) < w                                 # (1, LOUT)
    n = float(h * w)
    s1 = jnp.sum(jnp.where(valid, prod, 0.0), axis=-1, keepdims=True)
    s2 = jnp.sum(jnp.where(valid, prod * prod, 0.0), axis=-1, keepdims=True)
    mu = s1 / n
    var = s2 / n - mu * mu                                  # biased, as PyTorch
    normed = (prod - mu) * lax.rsqrt(var + _EPS)

    # 1x1 conv + identity residual (residual == center tap of the padded input).
    lin = jnp.dot(wl_ref[...].astype(jnp.float32), normed,
                  preferred_element_type=jnp.float32)
    lin = lin + bl_ref[...].astype(jnp.float32)
    res = xp[:, wp + 1:wp + 1 + lout]                       # == x on valid lanes
    o_ref[0] = (lin + res).astype(o_ref.dtype)


def convblock_forward(x, w_conv, b_conv, w_gate, b_gate, w_lin, b_lin):
    """Equivalent of Convblock.forward(x) for the default (identity-projection,
    stride=1, 3x3, padding=1) configuration.  x is NCHW."""
    B, c_in, H, W = x.shape
    c_out = w_conv.shape[0]
    if c_out != c_in:
        # TODO(synk): 1x1-conv projection / stride != 1 path not implemented.
        raise NotImplementedError("only the identity-projection path is supported")

    wp = W + 2
    lp = (H + 3) * wp
    lout = H * wp

    # Zero-pad spatially (1 top / 1 left / 1 right for the 3x3 halo, plus two
    # extra bottom rows so every lane-shifted slice stays in bounds), then
    # flatten H/W — the flatten is a free, layout-preserving reshape in HBM.
    xp = jnp.pad(x, ((0, 0), (0, 0), (1, 2), (1, 1))).reshape(B, c_in, lp)

    # Stack conv + gate weights so both 3x3 convs share one matmul per tap:
    # (9 taps, 2*C_out, C_in), tap index = dy*3 + dx.
    wcc = jnp.concatenate([w_conv, w_gate], axis=0)          # (2C, C, 3, 3)
    wcc = jnp.transpose(wcc, (2, 3, 0, 1)).reshape(9, 2 * c_out, c_in)
    bcc = jnp.concatenate([b_conv, b_gate], axis=0).reshape(2 * c_out, 1)
    wl = w_lin.reshape(c_out, c_out)
    bl = b_lin.reshape(c_out, 1)

    kernel = functools.partial(_convblock_kernel, h=H, w=W, c_out=c_out)

    out_flat = pl.pallas_call(
        kernel,
        out_shape=jax.ShapeDtypeStruct((B, c_out, lout), x.dtype),
        grid_spec=pltpu.PrefetchScalarGridSpec(
            num_scalar_prefetch=0,
            grid=(B,),
            in_specs=[
                pl.BlockSpec((1, c_in, lp), lambda b: (b, 0, 0)),
                pl.BlockSpec((9, 2 * c_out, c_in), lambda b: (0, 0, 0)),
                pl.BlockSpec((2 * c_out, 1), lambda b: (0, 0)),
                pl.BlockSpec((c_out, c_out), lambda b: (0, 0)),
                pl.BlockSpec((c_out, 1), lambda b: (0, 0)),
            ],
            out_specs=pl.BlockSpec((1, c_out, lout), lambda b: (b, 0, 0)),
        ),
        compiler_params=pltpu.CompilerParams(
            dimension_semantics=("parallel",)),
    )(xp, wcc, bcc, wl, bl)

    # Drop the two wrap-around columns per row and restore (B, C, H, W).
    return out_flat.reshape(B, c_out, H, wp)[:, :, :, :W]


def _reference(x, w_conv, b_conv, w_gate, b_gate, w_lin, b_lin):
    """Pure-JAX reference matching the PyTorch module semantics."""
    dn = ("NCHW", "OIHW", "NCHW")
    hp = lax.Precision.HIGHEST
    x1 = lax.conv_general_dilated(x, w_conv, (1, 1), ((1, 1), (1, 1)),
                                  dimension_numbers=dn, precision=hp)
    x1 = x1 + b_conv[None, :, None, None]
    x2 = lax.conv_general_dilated(x, w_gate, (1, 1), ((1, 1), (1, 1)),
                                  dimension_numbers=dn, precision=hp)
    x2 = jax.nn.gelu(x2 + b_gate[None, :, None, None], approximate=False)
    out = x1 * x2
    mu = jnp.mean(out, axis=(2, 3), keepdims=True)
    var = jnp.var(out, axis=(2, 3), keepdims=True)           # biased
    out = (out - mu) / jnp.sqrt(var + _EPS)
    out = jnp.einsum("oc,bchw->bohw", w_lin, out, precision=hp)
    out = out + b_lin[None, :, None, None]
    return out + x


if __name__ == "__main__":
    key = jax.random.PRNGKey(0)
    B, C, H, W = 2, 4, 16, 16

    ks = jax.random.split(key, 7)
    s = 0.2
    x = jax.random.normal(ks[0], (B, C, H, W), dtype=jnp.float32)
    w_conv = s * jax.random.normal(ks[1], (C, C, 3, 3), dtype=jnp.float32)
    b_conv = s * jax.random.normal(ks[2], (C,), dtype=jnp.float32)
    w_gate = s * jax.random.normal(ks[3], (C, C, 3, 3), dtype=jnp.float32)
    b_gate = s * jax.random.normal(ks[4], (C,), dtype=jnp.float32)
    w_lin = s * jax.random.normal(ks[5], (C, C), dtype=jnp.float32)
    b_lin = s * jax.random.normal(ks[6], (C,), dtype=jnp.float32)

    out = jax.jit(convblock_forward)(x, w_conv, b_conv, w_gate, b_gate,
                                     w_lin, b_lin)
    out = jax.block_until_ready(out)

    ref = _reference(x, w_conv, b_conv, w_gate, b_gate, w_lin, b_lin)
    assert out.shape == (B, C, H, W), out.shape
    max_err = float(jnp.max(jnp.abs(out - ref)))
    assert jnp.allclose(out, ref, atol=2e-4, rtol=2e-4), max_err

    print("KERNEL_OK")
</pallas_src>

<mosaic_0001>
module attributes {stable_mosaic.version = 11 : i64} {
  func.func @_convblock_kernel(%arg0: i32, %arg1: memref<1x4x342xf32, #tpu.memory_space<vmem>>, %arg2: memref<9x8x4xf32, #tpu.memory_space<vmem>>, %arg3: memref<8x1xf32, #tpu.memory_space<vmem>>, %arg4: memref<4x4xf32, #tpu.memory_space<vmem>>, %arg5: memref<4x1xf32, #tpu.memory_space<vmem>>, %arg6: memref<1x4x288xf32, #tpu.memory_space<vmem>>) attributes {dimension_semantics = [#tpu.dimension_semantics<parallel>], iteration_bounds = array<i64: 2>, scalar_prefetch = 0 : i64, scratch_operands = 0 : i64, tpu.core_type = #tpu.core_type<tc>, window_params = [{transform_indices = @transform_0, window_bounds = array<i64: 1, 4, 342>}, {pipeline_mode = #tpu.pipeline_mode<synchronous>, transform_indices = @transform_1, window_bounds = array<i64: 9, 8, 4>}, {pipeline_mode = #tpu.pipeline_mode<synchronous>, transform_indices = @transform_2, window_bounds = array<i64: 8, 1>}, {pipeline_mode = #tpu.pipeline_mode<synchronous>, transform_indices = @transform_3, window_bounds = array<i64: 4, 4>}, {pipeline_mode = #tpu.pipeline_mode<synchronous>, transform_indices = @transform_4, window_bounds = array<i64: 4, 1>}, {transform_indices = @transform_5, window_bounds = array<i64: 1, 4, 288>}]} {
    %c0 = arith.constant 0 : index
    %c0_0 = arith.constant 0 : index
    %c0_1 = arith.constant 0 : index
    %0 = vector.load %arg1[%c0, %c0_0, %c0_1] : memref<1x4x342xf32, #tpu.memory_space<vmem>>, vector<1x4x342xf32>
    %1 = vector.shape_cast %0 : vector<1x4x342xf32> to vector<4x342xf32>
    %cst = arith.constant 0.000000e+00 : f32
    %2 = vector.broadcast %cst : f32 to vector<8x288xf32>
    %3 = vector.extract_strided_slice %1 {offsets = [0, 0], sizes = [4, 288], strides = [1, 1]} : vector<4x342xf32> to vector<4x288xf32>
    %c0_2 = arith.constant 0 : index
    %c0_3 = arith.constant 0 : index
    %c0_4 = arith.constant 0 : index
    %4 = vector.load %arg2[%c0_2, %c0_3, %c0_4] : memref<9x8x4xf32, #tpu.memory_space<vmem>>, vector<1x8x4xf32>
    %5 = vector.shape_cast %4 : vector<1x8x4xf32> to vector<8x4xf32>
    %cst_5 = arith.constant dense<0.000000e+00> : vector<8x288xf32>
    %6 = tpu.matmul %5, %3, %cst_5 {dimension_numbers = #tpu.dot_dimension_numbers<[1], [0], [0], [1], [0, 0, 1, 1], [], []>} : vector<8x4xf32>, vector<4x288xf32>, vector<8x288xf32> -> vector<8x288xf32>
    %7 = arith.addf %2, %6 : vector<8x288xf32>
    %8 = vector.extract_strided_slice %1 {offsets = [0, 1], sizes = [4, 288], strides = [1, 1]} : vector<4x342xf32> to vector<4x288xf32>
    %c1 = arith.constant 1 : index
    %c0_6 = arith.constant 0 : index
    %c0_7 = arith.constant 0 : index
    %9 = vector.load %arg2[%c1, %c0_6, %c0_7] : memref<9x8x4xf32, #tpu.memory_space<vmem>>, vector<1x8x4xf32>
    %10 = vector.shape_cast %9 : vector<1x8x4xf32> to vector<8x4xf32>
    %cst_8 = arith.constant dense<0.000000e+00> : vector<8x288xf32>
    %11 = tpu.matmul %10, %8, %cst_8 {dimension_numbers = #tpu.dot_dimension_numbers<[1], [0], [0], [1], [0, 0, 1, 1], [], []>} : vector<8x4xf32>, vector<4x288xf32>, vector<8x288xf32> -> vector<8x288xf32>
    %12 = arith.addf %7, %11 : vector<8x288xf32>
    %13 = vector.extract_strided_slice %1 {offsets = [0, 2], sizes = [4, 288], strides = [1, 1]} : vector<4x342xf32> to vector<4x288xf32>
    %c2 = arith.constant 2 : index
    %c0_9 = arith.constant 0 : index
    %c0_10 = arith.constant 0 : index
    %14 = vector.load %arg2[%c2, %c0_9, %c0_10] : memref<9x8x4xf32, #tpu.memory_space<vmem>>, vector<1x8x4xf32>
    %15 = vector.shape_cast %14 : vector<1x8x4xf32> to vector<8x4xf32>
    %cst_11 = arith.constant dense<0.000000e+00> : vector<8x288xf32>
    %16 = tpu.matmul %15, %13, %cst_11 {dimension_numbers = #tpu.dot_dimension_numbers<[1], [0], [0], [1], [0, 0, 1, 1], [], []>} : vector<8x4xf32>, vector<4x288xf32>, vector<8x288xf32> -> vector<8x288xf32>
    %17 = arith.addf %12, %16 : vector<8x288xf32>
    %18 = vector.extract_strided_slice %1 {offsets = [0, 18], sizes = [4, 288], strides = [1, 1]} : vector<4x342xf32> to vector<4x288xf32>
    %c3 = arith.constant 3 : index
    %c0_12 = arith.constant 0 : index
    %c0_13 = arith.constant 0 : index
    %19 = vector.load %arg2[%c3, %c0_12, %c0_13] : memref<9x8x4xf32, #tpu.memory_space<vmem>>, vector<1x8x4xf32>
    %20 = vector.shape_cast %19 : vector<1x8x4xf32> to vector<8x4xf32>
    %cst_14 = arith.constant dense<0.000000e+00> : vector<8x288xf32>
    %21 = tpu.matmul %20, %18, %cst_14 {dimension_numbers = #tpu.dot_dimension_numbers<[1], [0], [0], [1], [0, 0, 1, 1], [], []>} : vector<8x4xf32>, vector<4x288xf32>, vector<8x288xf32> -> vector<8x288xf32>
    %22 = arith.addf %17, %21 : vector<8x288xf32>
    %23 = vector.extract_strided_slice %1 {offsets = [0, 19], sizes = [4, 288], strides = [1, 1]} : vector<4x342xf32> to vector<4x288xf32>
    %c4 = arith.constant 4 : index
    %c0_15 = arith.constant 0 : index
    %c0_16 = arith.constant 0 : index
    %24 = vector.load %arg2[%c4, %c0_15, %c0_16] : memref<9x8x4xf32, #tpu.memory_space<vmem>>, vector<1x8x4xf32>
    %25 = vector.shape_cast %24 : vector<1x8x4xf32> to vector<8x4xf32>
    %cst_17 = arith.constant dense<0.000000e+00> : vector<8x288xf32>
    %26 = tpu.matmul %25, %23, %cst_17 {dimension_numbers = #tpu.dot_dimension_numbers<[1], [0], [0], [1], [0, 0, 1, 1], [], []>} : vector<8x4xf32>, vector<4x288xf32>, vector<8x288xf32> -> vector<8x288xf32>
    %27 = arith.addf %22, %26 : vector<8x288xf32>
    %28 = vector.extract_strided_slice %1 {offsets = [0, 20], sizes = [4, 288], strides = [1, 1]} : vector<4x342xf32> to vector<4x288xf32>
    %c5 = arith.constant 5 : index
    %c0_18 = arith.constant 0 : index
    %c0_19 = arith.constant 0 : index
    %29 = vector.load %arg2[%c5, %c0_18, %c0_19] : memref<9x8x4xf32, #tpu.memory_space<vmem>>, vector<1x8x4xf32>
    %30 = vector.shape_cast %29 : vector<1x8x4xf32> to vector<8x4xf32>
    %cst_20 = arith.constant dense<0.000000e+00> : vector<8x288xf32>
    %31 = tpu.matmul %30, %28, %cst_20 {dimension_numbers = #tpu.dot_dimension_numbers<[1], [0], [0], [1], [0, 0, 1, 1], [], []>} : vector<8x4xf32>, vector<4x288xf32>, vector<8x288xf32> -> vector<8x288xf32>
    %32 = arith.addf %27, %31 : vector<8x288xf32>
    %33 = vector.extract_strided_slice %1 {offsets = [0, 36], sizes = [4, 288], strides = [1, 1]} : vector<4x342xf32> to vector<4x288xf32>
    %c6 = arith.constant 6 : index
    %c0_21 = arith.constant 0 : index
    %c0_22 = arith.constant 0 : index
    %34 = vector.load %arg2[%c6, %c0_21, %c0_22] : memref<9x8x4xf32, #tpu.memory_space<vmem>>, vector<1x8x4xf32>
    %35 = vector.shape_cast %34 : vector<1x8x4xf32> to vector<8x4xf32>
    %cst_23 = arith.constant dense<0.000000e+00> : vector<8x288xf32>
    %36 = tpu.matmul %35, %33, %cst_23 {dimension_numbers = #tpu.dot_dimension_numbers<[1], [0], [0], [1], [0, 0, 1, 1], [], []>} : vector<8x4xf32>, vector<4x288xf32>, vector<8x288xf32> -> vector<8x288xf32>
    %37 = arith.addf %32, %36 : vector<8x288xf32>
    %38 = vector.extract_strided_slice %1 {offsets = [0, 37], sizes = [4, 288], strides = [1, 1]} : vector<4x342xf32> to vector<4x288xf32>
    %c7 = arith.constant 7 : index
    %c0_24 = arith.constant 0 : index
    %c0_25 = arith.constant 0 : index
    %39 = vector.load %arg2[%c7, %c0_24, %c0_25] : memref<9x8x4xf32, #tpu.memory_space<vmem>>, vector<1x8x4xf32>
    %40 = vector.shape_cast %39 : vector<1x8x4xf32> to vector<8x4xf32>
    %cst_26 = arith.constant dense<0.000000e+00> : vector<8x288xf32>
    %41 = tpu.matmul %40, %38, %cst_26 {dimension_numbers = #tpu.dot_dimension_numbers<[1], [0], [0], [1], [0, 0, 1, 1], [], []>} : vector<8x4xf32>, vector<4x288xf32>, vector<8x288xf32> -> vector<8x288xf32>
    %42 = arith.addf %37, %41 : vector<8x288xf32>
    %43 = vector.extract_strided_slice %1 {offsets = [0, 38], sizes = [4, 288], strides = [1, 1]} : vector<4x342xf32> to vector<4x288xf32>
    %c8 = arith.constant 8 : index
    %c0_27 = arith.constant 0 : index
    %c0_28 = arith.constant 0 : index
    %44 = vector.load %arg2[%c8, %c0_27, %c0_28] : memref<9x8x4xf32, #tpu.memory_space<vmem>>, vector<1x8x4xf32>
    %45 = vector.shape_cast %44 : vector<1x8x4xf32> to vector<8x4xf32>
    %cst_29 = arith.constant dense<0.000000e+00> : vector<8x288xf32>
    %46 = tpu.matmul %45, %43, %cst_29 {dimension_numbers = #tpu.dot_dimension_numbers<[1], [0], [0], [1], [0, 0, 1, 1], [], []>} : vector<8x4xf32>, vector<4x288xf32>, vector<8x288xf32> -> vector<8x288xf32>
    %47 = arith.addf %42, %46 : vector<8x288xf32>
    %c0_30 = arith.constant 0 : index
    %c0_31 = arith.constant 0 : index
    %48 = vector.load %arg3[%c0_30, %c0_31] : memref<8x1xf32, #tpu.memory_space<vmem>>, vector<8x1xf32>
    %49 = vector.broadcast %48 : vector<8x1xf32> to vector<8x288xf32>
    %50 = arith.addf %47, %49 : vector<8x288xf32>
    %51 = vector.extract_strided_slice %50 {offsets = [0, 0], sizes = [4, 288], strides = [1, 1]} : vector<8x288xf32> to vector<4x288xf32>
    %52 = vector.extract_strided_slice %50 {offsets = [4, 0], sizes = [4, 288], strides = [1, 1]} : vector<8x288xf32> to vector<4x288xf32>
    %cst_32 = arith.constant 5.000000e-01 : f32
    %53 = vector.broadcast %cst_32 : f32 to vector<4x288xf32>
    %54 = arith.mulf %53, %52 : vector<4x288xf32>
    %cst_33 = arith.constant 0.707106769 : f32
    %55 = vector.broadcast %cst_33 : f32 to vector<4x288xf32>
    %56 = arith.mulf %52, %55 : vector<4x288xf32>
    %57 = math.absf %56 : vector<4x288xf32>
    %cst_34 = arith.constant 0.327591091 : f32
    %58 = vector.broadcast %cst_34 : f32 to vector<4x288xf32>
    %59 = arith.mulf %58, %57 : vector<4x288xf32>
    %cst_35 = arith.constant 1.000000e+00 : f32
    %60 = vector.broadcast %cst_35 : f32 to vector<4x288xf32>
    %61 = arith.addf %60, %59 : vector<4x288xf32>
    %cst_36 = arith.constant 1.000000e+00 : f32
    %62 = vector.broadcast %cst_36 : f32 to vector<4x288xf32>
    %63 = arith.divf %62, %61 : vector<4x288xf32>
    %cst_37 = arith.constant 1.06140542 : f32
    %64 = vector.broadcast %cst_37 : f32 to vector<4x288xf32>
    %65 = arith.mulf %64, %63 : vector<4x288xf32>
    %cst_38 = arith.constant -1.45315206 : f32
    %66 = vector.broadcast %cst_38 : f32 to vector<4x288xf32>
    %67 = arith.addf %65, %66 : vector<4x288xf32>
    %68 = arith.mulf %67, %63 : vector<4x288xf32>
    %cst_39 = arith.constant 1.42141378 : f32
    %69 = vector.broadcast %cst_39 : f32 to vector<4x288xf32>
    %70 = arith.addf %68, %69 : vector<4x288xf32>
    %71 = arith.mulf %70, %63 : vector<4x288xf32>
    %cst_40 = arith.constant -0.284496725 : f32
    %72 = vector.broadcast %cst_40 : f32 to vector<4x288xf32>
    %73 = arith.addf %71, %72 : vector<4x288xf32>
    %74 = arith.mulf %73, %63 : vector<4x288xf32>
    %cst_41 = arith.constant 0.254829586 : f32
    %75 = vector.broadcast %cst_41 : f32 to vector<4x288xf32>
    %76 = arith.addf %74, %75 : vector<4x288xf32>
    %77 = arith.mulf %76, %63 : vector<4x288xf32>
    %cst_42 = arith.constant 0.000000e+00 : f32
    %78 = vector.broadcast %cst_42 : f32 to vector<4x288xf32>
    %79 = arith.subf %78, %57 : vector<4x288xf32>
    %80 = arith.mulf %79, %57 : vector<4x288xf32>
    %81 = math.exp %80 : vector<4x288xf32>
    %82 = arith.mulf %77, %81 : vector<4x288xf32>
    %cst_43 = arith.constant 1.000000e+00 : f32
    %83 = vector.broadcast %cst_43 : f32 to vector<4x288xf32>
    %84 = arith.subf %83, %82 : vector<4x288xf32>
    %cst_44 = arith.constant 0.000000e+00 : f32
    %85 = vector.broadcast %cst_44 : f32 to vector<4x288xf32>
    %86 = arith.cmpf oge, %56, %85 : vector<4x288xf32>
    %cst_45 = arith.constant 0.000000e+00 : f32
    %87 = vector.broadcast %cst_45 : f32 to vector<4x288xf32>
    %88 = arith.subf %87, %84 : vector<4x288xf32>
    %89 = arith.select %86, %84, %88 : vector<4x288xi1>, vector<4x288xf32>
    %cst_46 = arith.constant 1.000000e+00 : f32
    %90 = vector.broadcast %cst_46 : f32 to vector<4x288xf32>
    %91 = arith.addf %90, %89 : vector<4x288xf32>
    %92 = arith.mulf %54, %91 : vector<4x288xf32>
    %93 = arith.mulf %51, %92 : vector<4x288xf32>
    %94 = tpu.iota {dimensions = array<i32: 1>} : vector<1x288xi32>
    %c18_i32 = arith.constant 18 : i32
    %c0_i32 = arith.constant 0 : i32
    %95 = arith.cmpi eq, %c18_i32, %c0_i32 : i32
    %c1_i32 = arith.constant 1 : i32
    %96 = arith.select %95, %c1_i32, %c18_i32 : i32
    %97 = vector.broadcast %96 : i32 to vector<1x288xi32>
    %98 = arith.remsi %94, %97 : vector<1x288xi32>
    %c0_i32_47 = arith.constant 0 : i32
    %99 = vector.broadcast %c0_i32_47 : i32 to vector<1x288xi32>
    %100 = arith.cmpi ne, %98, %99 : vector<1x288xi32>
    %c0_i32_48 = arith.constant 0 : i32
    %101 = vector.broadcast %c0_i32_48 : i32 to vector<1x288xi32>
    %102 = arith.cmpi slt, %98, %101 : vector<1x288xi32>
    %c0_i32_49 = arith.constant 0 : i32
    %103 = arith.cmpi slt, %96, %c0_i32_49 : i32
    %104 = vector.broadcast %103 : i1 to vector<1x288xi1>
    %105 = vector.broadcast %104 : vector<1x288xi1> to vector<1x288xi1>
    %106 = arith.xori %102, %105 : vector<1x288xi1>
    %107 = arith.andi %106, %100 : vector<1x288xi1>
    %108 = vector.broadcast %96 : i32 to vector<1x288xi32>
    %109 = arith.addi %98, %108 : vector<1x288xi32>
    %110 = arith.select %107, %109, %98 : vector<1x288xi1>, vector<1x288xi32>
    %c16_i32 = arith.constant 16 : i32
    %111 = vector.broadcast %c16_i32 : i32 to vector<1x288xi32>
    %112 = arith.cmpi slt, %110, %111 : vector<1x288xi32>
    %cst_50 = arith.constant 0.000000e+00 : f32
    %113 = vector.shape_cast %112 : vector<1x288xi1> to vector<1x288xi1>
    %114 = vector.broadcast %113 : vector<1x288xi1> to vector<4x288xi1>
    %115 = vector.broadcast %cst_50 : f32 to vector<4x288xf32>
    %116 = arith.select %114, %93, %115 : vector<4x288xi1>, vector<4x288xf32>
    %cst_51 = arith.constant dense<0.000000e+00> : vector<4xf32>
    %117 = vector.multi_reduction <add>, %116, %cst_51 [1] : vector<4x288xf32> to vector<4xf32>
    %118 = vector.shape_cast %117 : vector<4xf32> to vector<4x1xf32>
    %119 = arith.mulf %93, %93 : vector<4x288xf32>
    %cst_52 = arith.constant 0.000000e+00 : f32
    %120 = vector.shape_cast %112 : vector<1x288xi1> to vector<1x288xi1>
    %121 = vector.broadcast %120 : vector<1x288xi1> to vector<4x288xi1>
    %122 = vector.broadcast %cst_52 : f32 to vector<4x288xf32>
    %123 = arith.select %121, %119, %122 : vector<4x288xi1>, vector<4x288xf32>
    %cst_53 = arith.constant dense<0.000000e+00> : vector<4xf32>
    %124 = vector.multi_reduction <add>, %123, %cst_53 [1] : vector<4x288xf32> to vector<4xf32>
    %125 = vector.shape_cast %124 : vector<4xf32> to vector<4x1xf32>
    %cst_54 = arith.constant 2.560000e+02 : f32
    %126 = vector.broadcast %cst_54 : f32 to vector<4x1xf32>
    %127 = arith.divf %118, %126 : vector<4x1xf32>
    %cst_55 = arith.constant 2.560000e+02 : f32
    %128 = vector.broadcast %cst_55 : f32 to vector<4x1xf32>
    %129 = arith.divf %125, %128 : vector<4x1xf32>
    %130 = arith.mulf %127, %127 : vector<4x1xf32>
    %131 = arith.subf %129, %130 : vector<4x1xf32>
    %132 = vector.broadcast %127 : vector<4x1xf32> to vector<4x288xf32>
    %133 = arith.subf %93, %132 : vector<4x288xf32>
    %cst_56 = arith.constant 9.99999974E-6 : f32
    %134 = vector.broadcast %cst_56 : f32 to vector<4x1xf32>
    %135 = arith.addf %131, %134 : vector<4x1xf32>
    %136 = math.rsqrt %135 : vector<4x1xf32>
    %137 = vector.broadcast %136 : vector<4x1xf32> to vector<4x288xf32>
    %138 = arith.mulf %133, %137 : vector<4x288xf32>
    %c0_57 = arith.constant 0 : index
    %c0_58 = arith.constant 0 : index
    %139 = vector.load %arg4[%c0_57, %c0_58] : memref<4x4xf32, #tpu.memory_space<vmem>>, vector<4x4xf32>
    %cst_59 = arith.constant dense<0.000000e+00> : vector<4x288xf32>
    %140 = tpu.matmul %139, %138, %cst_59 {dimension_numbers = #tpu.dot_dimension_numbers<[1], [0], [0], [1], [0, 0, 1, 1], [], []>} : vector<4x4xf32>, vector<4x288xf32>, vector<4x288xf32> -> vector<4x288xf32>
    %c0_60 = arith.constant 0 : index
    %c0_61 = arith.constant 0 : index
    %141 = vector.load %arg5[%c0_60, %c0_61] : memref<4x1xf32, #tpu.memory_space<vmem>>, vector<4x1xf32>
    %142 = vector.broadcast %141 : vector<4x1xf32> to vector<4x288xf32>
    %143 = arith.addf %140, %142 : vector<4x288xf32>
    %144 = vector.extract_strided_slice %1 {offsets = [0, 19], sizes = [4, 288], strides = [1, 1]} : vector<4x342xf32> to vector<4x288xf32>
    %145 = arith.addf %143, %144 : vector<4x288xf32>
    %c0_62 = arith.constant 0 : index
    %c0_63 = arith.constant 0 : index
    %c0_64 = arith.constant 0 : index
    %146 = vector.load %arg6[%c0_62, %c0_63, %c0_64] : memref<1x4x288xf32, #tpu.memory_space<vmem>>, vector<1x4x288xf32>
    %147 = vector.shape_cast %146 : vector<1x4x288xf32> to vector<4x288xf32>
    %148 = vector.shape_cast %145 : vector<4x288xf32> to vector<1x4x288xf32>
    tpu.vector_store %arg6[%c0_62, %c0_63, %c0_64], %148 {strides = array<i32>} : memref<1x4x288xf32, #tpu.memory_space<vmem>>, vector<1x4x288xf32>,
    return
  }
  func.func @transform_0(%arg0: i32) -> (i32, i32, i32) {
    %c0_i32 = arith.constant 0 : i32
    %c0_i32_0 = arith.constant 0 : i32
    %c0_i32_1 = arith.constant 0 : i32
    return %arg0, %c0_i32, %c0_i32_0 : i32, i32, i32
  }
  func.func @transform_1(%arg0: i32) -> (i32, i32, i32) {
    %c0_i32 = arith.constant 0 : i32
    %c0_i32_0 = arith.constant 0 : i32
    %c0_i32_1 = arith.constant 0 : i32
    %c0_i32_2 = arith.constant 0 : i32
    return %c0_i32, %c0_i32_0, %c0_i32_1 : i32, i32, i32
  }
  func.func @transform_2(%arg0: i32) -> (i32, i32) {
    %c0_i32 = arith.constant 0 : i32
    %c0_i32_0 = arith.constant 0 : i32
    %c0_i32_1 = arith.constant 0 : i32
    return %c0_i32, %c0_i32_0 : i32, i32
  }
  func.func @transform_3(%arg0: i32) -> (i32, i32) {
    %c0_i32 = arith.constant 0 : i32
    %c0_i32_0 = arith.constant 0 : i32
    %c0_i32_1 = arith.constant 0 : i32
    return %c0_i32, %c0_i32_0 : i32, i32
  }
  func.func @transform_4(%arg0: i32) -> (i32, i32) {
    %c0_i32 = arith.constant 0 : i32
    %c0_i32_0 = arith.constant 0 : i32
    %c0_i32_1 = arith.constant 0 : i32
    return %c0_i32, %c0_i32_0 : i32, i32
  }
  func.func @transform_5(%arg0: i32) -> (i32, i32, i32) {
    %c0_i32 = arith.constant 0 : i32
    %c0_i32_0 = arith.constant 0 : i32
    %c0_i32_1 = arith.constant 0 : i32
    return %arg0, %c0_i32, %c0_i32_0 : i32, i32, i32
  }
}

</mosaic_0001>

<llo_original>
// kernel: convblock_forward.1
$region0: #{convblock_forward.1}
  #allocation0 [shape = 'u32[]', space=smem, size = 0x4, offset = 0x4, fixed_abs, tag = 'smem constant byte address 0x4 - core index']
  #allocation1 [shape = 'u32[144,128]{1,0:T(1,128)}', space=vmem, size = 0x12000, scoped, tag = 'internal scratch']
  %s0 = inlined_call_operand.vmem [shape: f32[2,4,342], index: 0, kind: input, shape index: {}]
  %s1 = inlined_call_operand.vmem [shape: f32[9,8,4], index: 1, kind: input, shape index: {}]
  %s2 = inlined_call_operand.vmem [shape: f32[8,1], index: 2, kind: input, shape index: {}]
  %s3 = inlined_call_operand.vmem [shape: f32[4,4], index: 3, kind: input, shape index: {}]
  %s4 = inlined_call_operand.vmem [shape: f32[4,1], index: 4, kind: input, shape index: {}]
  %s5 = inlined_call_operand.vmem [shape: f32[2,4,288], index: 5, kind: output, shape index: {}]
  %s6 = sld [smem:[#allocation0]]
  $region53: #{convblock_forward.1} parent=0
    _
  %s8 = ssub.s32 1, %s6
  %s9 = scalar_select 0, %s8, %s6
  loop: start=0, step=1, limit=4
  $region2: #{convblock_forward.1} parent=0 // loop_pre_header
    _
  $region3: #{convblock_forward.1} parent=0 // loop_header
    %s11 = sphi 0, %s15
    %p12 = scmp.ge.s32.totalorder %s11, 4
    %s21 = sphi 0, %s23
    %s24 = sphi 0, %s21
    %s25 = sphi 0, %s24
    %s41 = sphi 0, %s25
    %s45 = sphi 0, %s45
    %s47 = sphi 0, %s45
    %s48 = sphi 0, %s47
    %s62 = sphi 0, %s48
    %s66 = sphi 0, %s66
    %s68 = sphi 0, %s66
    %s69 = sphi 0, %s68
    %s83 = sphi 0, %s69
    %s87 = sphi 0, %s87
    %s89 = sphi 0, %s87
    %s90 = sphi 0, %s89
    %s104 = sphi 0, %s90
    %s108 = sphi 0, %s108
    %s110 = sphi 0, %s108
    %s111 = sphi 0, %s110
    %s125 = sphi 0, %s111
    %s131 = sphi 0, %s133
    %s134 = sphi 0, %s131
    %s135 = sphi 0, %s134
    %s151 = sphi 0, %s135
  $region4: #{convblock_forward.1} parent=0 // loop_header_branch
    %14 = sbr.rel (%p12) target = $region8
  $region5: #{convblock_forward.1} parent=0 // loop_body
    %s16 = ssub.s32 %s11, 1
    %s17 = ssub.s32 %s11, 2
    %s18 = sadd.s32 %s11, 1
    %s19 = ssub.s32 %s11, %s18
    %p20 = scmp.eq.s32.totalorder %s19, 0
    %s22 = sadd.s32 %s21, 1
    %s23 = scalar_select %p20, %s21, %s22
    %p26 = pneg %p20
    %p27 = scmp.eq.s32.totalorder %s11, 1
    %p28 = por %p26, %p27
    %p29 = scmp.ne.s32.totalorder %s21, %s24
    %p30 = scmp.eq.s32.totalorder %s11, 0
    %p31 = por %p29, %p30
    %p32 = scmp.ne.s32.totalorder %s21, %s24
    %p33 = scmp.eq.s32.totalorder %s16, 1
    %p34 = por %p32, %p33
    %p35 = scmp.ne.s32.totalorder %s24, %s25
    %p36 = scmp.eq.s32.totalorder %s16, 0
    %p37 = por %p35, %p36
    %p38 = scmp.ne.s32.totalorder %s24, %s25
    %p39 = scmp.eq.s32.totalorder %s17, 1
    %p40 = por %p38, %p39
    %p42 = scmp.ne.s32.totalorder %s25, %s41
    %p43 = scmp.eq.s32.totalorder %s17, 0
    %p44 = por %p42, %p43
    %s46 = sadd.s32 %s45, 1
    %p49 = scmp.eq.s32.totalorder %s11, 1
    %p50 = scmp.ne.s32.totalorder %s45, %s47
    %p51 = scmp.eq.s32.totalorder %s11, 0
    %p52 = por %p50, %p51
    %p53 = scmp.ne.s32.totalorder %s45, %s47
    %p54 = scmp.eq.s32.totalorder %s16, 1
    %p55 = por %p53, %p54
    %p56 = scmp.ne.s32.totalorder %s47, %s48
    %p57 = scmp.eq.s32.totalorder %s16, 0
    %p58 = por %p56, %p57
    %p59 = scmp.ne.s32.totalorder %s47, %s48
    %p60 = scmp.eq.s32.totalorder %s17, 1
    %p61 = por %p59, %p60
    %p63 = scmp.ne.s32.totalorder %s48, %s62
    %p64 = scmp.eq.s32.totalorder %s17, 0
    %p65 = por %p63, %p64
    %s67 = sadd.s32 %s66, 1
    %p70 = scmp.eq.s32.totalorder %s11, 1
    %p71 = scmp.ne.s32.totalorder %s66, %s68
    %p72 = scmp.eq.s32.totalorder %s11, 0
    %p73 = por %p71, %p72
    %p74 = scmp.ne.s32.totalorder %s66, %s68
    %p75 = scmp.eq.s32.totalorder %s16, 1
    %p76 = por %p74, %p75
    %p77 = scmp.ne.s32.totalorder %s68, %s69
    %p78 = scmp.eq.s32.totalorder %s16, 0
    %p79 = por %p77, %p78
    %p80 = scmp.ne.s32.totalorder %s68, %s69
    %p81 = scmp.eq.s32.totalorder %s17, 1
    %p82 = por %p80, %p81
    %p84 = scmp.ne.s32.totalorder %s69, %s83
    %p85 = scmp.eq.s32.totalorder %s17, 0
    %p86 = por %p84, %p85
    %s88 = sadd.s32 %s87, 1
    %p91 = scmp.eq.s32.totalorder %s11, 1
    %p92 = scmp.ne.s32.totalorder %s87, %s89
    %p93 = scmp.eq.s32.totalorder %s11, 0
    %p94 = por %p92, %p93
    %p95 = scmp.ne.s32.totalorder %s87, %s89
    %p96 = scmp.eq.s32.totalorder %s16, 1
    %p97 = por %p95, %p96
    %p98 = scmp.ne.s32.totalorder %s89, %s90
    %p99 = scmp.eq.s32.totalorder %s16, 0
    %p100 = por %p98, %p99
    %p101 = scmp.ne.s32.totalorder %s89, %s90
    %p102 = scmp.eq.s32.totalorder %s17, 1
    %p103 = por %p101, %p102
    %p105 = scmp.ne.s32.totalorder %s90, %s104
    %p106 = scmp.eq.s32.totalorder %s17, 0
    %p107 = por %p105, %p106
    %s109 = sadd.s32 %s108, 1
    %p112 = scmp.eq.s32.totalorder %s11, 1
    %p113 = scmp.ne.s32.totalorder %s108, %s110
    %p114 = scmp.eq.s32.totalorder %s11, 0
    %p115 = por %p113, %p114
    %p116 = scmp.ne.s32.totalorder %s108, %s110
    %p117 = scmp.eq.s32.totalorder %s16, 1
    %p118 = por %p116, %p117
    %p119 = scmp.ne.s32.totalorder %s110, %s111
    %p120 = scmp.eq.s32.totalorder %s16, 0
    %p121 = por %p119, %p120
    %p122 = scmp.ne.s32.totalorder %s110, %s111
    %p123 = scmp.eq.s32.totalorder %s17, 1
    %p124 = por %p122, %p123
    %p126 = scmp.ne.s32.totalorder %s111, %s125
    %p127 = scmp.eq.s32.totalorder %s17, 0
    %p128 = por %p126, %p127
    %s129 = ssub.s32 %s11, %s18
    %p130 = scmp.eq.s32.totalorder %s129, 0
    %s132 = sadd.s32 %s131, 1
    %s133 = scalar_select %p130, %s131, %s132
    %p136 = pneg %p130
    %p137 = scmp.eq.s32.totalorder %s11, 1
    %p138 = por %p136, %p137
    %p139 = scmp.ne.s32.totalorder %s131, %s134
    %p140 = scmp.eq.s32.totalorder %s11, 0
    %p141 = por %p139, %p140
    %p142 = scmp.ne.s32.totalorder %s131, %s134
    %p143 = scmp.eq.s32.totalorder %s16, 1
    %p144 = por %p142, %p143
    %p145 = scmp.ne.s32.totalorder %s134, %s135
    %p146 = scmp.eq.s32.totalorder %s16, 0
    %p147 = por %p145, %p146
    %p148 = scmp.ne.s32.totalorder %s134, %s135
    %p149 = scmp.eq.s32.totalorder %s17, 1
    %p150 = por %p148, %p149
    %p152 = scmp.ne.s32.totalorder %s135, %s151
    %p153 = scmp.eq.s32.totalorder %s17, 0
    %p154 = por %p152, %p153
    %p155 = scmp.le.s32.totalorder 1, %s11
    %p156 = scmp.lt.s32.totalorder %s11, 3
    %p157 = pnand %p155, %p156
    %p158 = pneg %p157
    // Predicated region
    $region9: #{convblock_forward.1} parent=5 // pred_check
      _
    $region10: #{convblock_forward.1} parent=5 // pred_check_branch
      %160 = sbr.rel (%p157) target = $region12
    $region11: #{convblock_forward.1} parent=5 // pred_region
      %s161 = ssub.s32 %s11, 1
      // Predicated region
      $region13: #{convblock_forward.1} parent=11 // pred_check
        %p162 = pneg %p58
      $region14: #{convblock_forward.1} parent=11 // pred_check_branch
        %164 = sbr.rel (%p162) target = $region16
      $region15: #{convblock_forward.1} parent=11 // pred_region
        _
      $region16: #{convblock_forward.1} parent=11 // pred_fallthru
        _
      // Predicated region
      $region17: #{convblock_forward.1} parent=11 // pred_check
        %p165 = pneg %p79
      $region18: #{convblock_forward.1} parent=11 // pred_check_branch
        %167 = sbr.rel (%p165) target = $region20
      $region19: #{convblock_forward.1} parent=11 // pred_region
        _
      $region20: #{convblock_forward.1} parent=11 // pred_fallthru
        _
      // Predicated region
      $region21: #{convblock_forward.1} parent=11 // pred_check
        %p168 = pneg %p100
      $region22: #{convblock_forward.1} parent=11 // pred_check_branch
        %170 = sbr.rel (%p168) target = $region24
      $region23: #{convblock_forward.1} parent=11 // pred_region
        _
      $region24: #{convblock_forward.1} parent=11 // pred_fallthru
        _
      // Predicated region
      $region25: #{convblock_forward.1} parent=11 // pred_check
        %p171 = pneg %p121
      $region26: #{convblock_forward.1} parent=11 // pred_check_branch
        %173 = sbr.rel (%p171) target = $region28
      $region27: #{convblock_forward.1} parent=11 // pred_region
        _
      $region28: #{convblock_forward.1} parent=11 // pred_fallthru
        _
    $region12: #{convblock_forward.1} parent=5 // pred_fallthru
      _
    %p174 = scmp.lt.s32.totalorder %s11, 2
    // Predicated region
    $region29: #{convblock_forward.1} parent=5 // pred_check
      %p175 = pneg %p174
    $region30: #{convblock_forward.1} parent=5 // pred_check_branch
      %177 = sbr.rel (%p175) target = $region32
    $region31: #{convblock_forward.1} parent=5 // pred_region
      // Predicated region
      $region33: #{convblock_forward.1} parent=31 // pred_check
        %p178 = pneg %p31
      $region34: #{convblock_forward.1} parent=31 // pred_check_branch
        %180 = sbr.rel (%p178) target = $region36
      $region35: #{convblock_forward.1} parent=31 // pred_region
        %p181 = scmp.lt.s32.totalorder %s11, 1
        %s182 = scalar_select %p181, %s11, 1
        %s183 = smul.addr %s182, 3
        %s184 = smul.addr %s183, 4
        %s185 = scalar_lea.vmem %s0, %s184
      $region36: #{convblock_forward.1} parent=31 // pred_fallthru
        _
    $region32: #{convblock_forward.1} parent=5 // pred_fallthru
      _
    %p186 = scmp.le.s32.totalorder 1, %s11
    %p187 = scmp.lt.s32.totalorder %s11, 3
    %p188 = pnand %p186, %p187
    %p189 = pneg %p188
    // Predicated region
    $region37: #{convblock_forward.1} parent=5 // pred_check
      _
    $region38: #{convblock_forward.1} parent=5 // pred_check_branch
      %191 = sbr.rel (%p188) target = $region40
    $region39: #{convblock_forward.1} parent=5 // pred_region
      %s192 = ssub.s32 %s11, 1
      %p193 = scmp.lt.s32.totalorder %s16, 1
      %s194 = scalar_select %p193, %s16, 1
      %s195 = smul.addr %s194, 3
      %s196 = smul.addr %s195, 4
      %s197 = scalar_lea.vmem %s0, %s196
      %p198 = pneg %p37
      %p199 = pneg %p34
      %p200 = pneg %p58
      %p201 = pneg %p55
      %p202 = pneg %p79
      %p203 = pneg %p76
      %p204 = pneg %p100
      %p205 = pneg %p97
      %p206 = pneg %p121
      %p207 = pneg %p118
      %p208 = pneg %p147
      %p209 = pneg %p144
      %p210 = scmp.lt.s32.totalorder %s16, 1
      %s211 = scalar_select %p210, %s16, 1
      %s212 = smul.addr %s211, 3
      %s213 = smul.addr %s212, 4
      %s214 = scalar_lea.vmem %s5, %s213
      %p215 = scmp.lt.s32.totalorder %s16, 1
      %s216 = scalar_select %p215, %s16, 1
      %s217 = smul.addr %s216, 3
      %s218 = smul.addr %s217, 4
      %s219 = scalar_lea.vmem %s0, %s218
      %p220 = scmp.lt.s32.totalorder %s16, 1
      %s221 = scalar_select %p220, %s16, 1
      %s222 = smul.addr %s221, 3
      %s223 = smul.addr %s222, 4
      %s224 = scalar_lea.vmem %s5, %s223
      %v225 = vld [vmem:[%s219] sm:$0xff]
      %v226 = vld [vmem:[%s219 + $0x8] sm:$0xf]
      %v227 = vld [vmem:[%s1] sm:$0xff]
      %s228 = scalar_lea.vmem %s1, 8
      %v229 = vld [vmem:[%s228] sm:$0xff]
      %v232 = vcombine.high %v225, %v225
      %233 = vrot.lane.b32.xlu0 %v225, 127
      %v234 = vpop.permute.xlu0 %233
      %235 = vrot.lane.b32.xlu0 %v232, 127
      %v236 = vpop.permute.xlu0 %235
      %237 = vrot.lane.b32.xlu0 %v226, 127
      %v238 = vpop.permute.xlu0 %237
      %vm239 = vcmask 1039360
      %v240 = vsel %vm239, %v234, %v236
      %v241 = vsel %vm239, %v236, %v238
      %vm242 = vcmask 31744
      %v244 = vsel %vm242, %v229, 0
      %vm246 = vcmask 1043456
      %v247 = vsel %vm246, %v240, 0
      %v249 = vsel %vm246, %v241, 0
      %v251 = vsel %vm246, %v238, 0
      %253 = vmatprep.subr.mxu0 %v249
      %254 = vmatpush1.msra.mxu0 %v247
      %255 = vmatprep.subr.mxu0 0.0
      %256 = vmatpush1.msra.mxu0 0.0
      %257 = vmatprep.subr.mxu0 0.0
      %258 = vmatpush1.msra.mxu0 0.0
      %259 = vmatprep.subr.mxu0 0.0
      %260 = vmatpush1.msra.mxu0 0.0
      %261 = vmatprep.subr.mxu0 0.0
      %262 = vmatpush1.msra.mxu0 0.0
      %263 = vmatprep.subr.mxu0 0.0
      %264 = vmatpush1.msra.mxu0 0.0
      %265 = vmatprep.subr.mxu0 0.0
      %266 = vmatpush1.msra.mxu0 0.0
      %267 = vmatprep.subr.mxu0 0.0
      %268 = vmatpush1.msra.mxu0 0.0
      %269 = vmatprep.subr.mxu0 0.0
      %270 = vmatpush1.msra.mxu0 0.0
      %271 = vmatprep.subr.mxu0 0.0
      %272 = vmatpush1.msra.mxu0 0.0
      %273 = vmatprep.subr.mxu0 0.0
      %274 = vmatpush1.msra.mxu0 0.0
      %275 = vmatprep.subr.mxu0 0.0
      %276 = vmatpush1.msra.mxu0 0.0
      %277 = vmatprep.subr.mxu0 0.0
      %278 = vmatpush1.msra.mxu0 0.0
      %279 = vmatprep.subr.mxu0 0.0
      %280 = vmatpush1.msra.mxu0 0.0
      %281 = vmatprep.subr.mxu0 0.0
      %282 = vmatpush1.msra.mxu0 0.0
      %283 = vmatprep.subr.mxu0 0.0
      %284 = vmatpush1.msra.mxu0 0.0
      %285 = vmatprep.subr.mxu0 0.0
      %286 = vmatpush1.msra.mxu0 0.0
      %287 = vmatprep.subr.mxu0 0.0
      %288 = vmatpush1.msra.mxu0 0.0
      %289 = vmatprep.subr.mxu0 0.0
      %290 = vmatpush1.msra.mxu0 0.0
      %291 = vmatprep.subr.mxu0 0.0
      %292 = vmatpush1.msra.mxu0 0.0
      %293 = vmatprep.subr.mxu0 0.0
      %294 = vmatpush1.msra.mxu0 0.0
      %295 = vmatprep.subr.mxu0 0.0
      %296 = vmatpush1.msra.mxu0 0.0
      %297 = vmatprep.subr.mxu0 0.0
      %298 = vmatpush1.msra.mxu0 0.0
      %299 = vmatprep.subr.mxu0 0.0
      %300 = vmatpush1.msra.mxu0 0.0
      %301 = vmatprep.subr.mxu0 0.0
      %302 = vmatpush1.msra.mxu0 0.0
      %303 = vmatprep.subr.mxu0 0.0
      %304 = vmatpush1.msra.mxu0 0.0
      %305 = vmatprep.subr.mxu0 0.0
      %306 = vmatpush1.msra.mxu0 0.0
      %307 = vmatprep.subr.mxu0 0.0
      %308 = vmatpush1.msra.mxu0 0.0
      %309 = vmatprep.subr.mxu0 0.0
      %310 = vmatpush1.msra.mxu0 0.0
      %311 = vmatprep.subr.mxu0 0.0
      %312 = vmatpush1.msra.mxu0 0.0
      %313 = vmatprep.subr.mxu0 0.0
      %314 = vmatpush1.msra.mxu0 0.0
      %315 = vmatprep.subr.mxu0 0.0
      %316 = vmatpush1.msra.mxu0 0.0
      %317 = vmatprep.mubr.f32.mxu0 0.0
      %318 = vmatmul.mubr.f32.gmra.mrb[0].mxu0 %v244
      %v319 = vpop.f32.mrb[0].mxu0
      %v320 = vadd.f32 0.0, %v319
      %v321 = vpop.f32.mrb[0].mxu0
      %v322 = vadd.f32 0.0, %v321
      %323 = vdwg.mxu0
      %324 = vmatprep.subr.mxu0 0.0
      %325 = vmatpush1.msra.mxu0 %v251
      %326 = vmatprep.subr.mxu0 0.0
      %327 = vmatpush1.msra.mxu0 0.0
      %328 = vmatprep.subr.mxu0 0.0
      %329 = vmatpush1.msra.mxu0 0.0
      %330 = vmatprep.subr.mxu0 0.0
      %331 = vmatpush1.msra.mxu0 0.0
      %332 = vmatprep.subr.mxu0 0.0
      %333 = vmatpush1.msra.mxu0 0.0
      %334 = vmatprep.subr.mxu0 0.0
      %335 = vmatpush1.msra.mxu0 0.0
      %336 = vmatprep.subr.mxu0 0.0
      %337 = vmatpush1.msra.mxu0 0.0
      %338 = vmatprep.subr.mxu0 0.0
      %339 = vmatpush1.msra.mxu0 0.0
      %340 = vmatprep.subr.mxu0 0.0
      %341 = vmatpush1.msra.mxu0 0.0
      %342 = vmatprep.subr.mxu0 0.0
      %343 = vmatpush1.msra.mxu0 0.0
      %344 = vmatprep.subr.mxu0 0.0
      %345 = vmatpush1.msra.mxu0 0.0
      %346 = vmatprep.subr.mxu0 0.0
      %347 = vmatpush1.msra.mxu0 0.0
      %348 = vmatprep.subr.mxu0 0.0
      %349 = vmatpush1.msra.mxu0 0.0
      %350 = vmatprep.subr.mxu0 0.0
      %351 = vmatpush1.msra.mxu0 0.0
      %352 = vmatprep.subr.mxu0 0.0
      %353 = vmatpush1.msra.mxu0 0.0
      %354 = vmatprep.subr.mxu0 0.0
      %355 = vmatpush1.msra.mxu0 0.0
      %356 = vmatprep.subr.mxu0 0.0
      %357 = vmatpush1.msra.mxu0 0.0
      %358 = vmatprep.subr.mxu0 0.0
      %359 = vmatpush1.msra.mxu0 0.0
      %360 = vmatprep.subr.mxu0 0.0
      %361 = vmatpush1.msra.mxu0 0.0
      %362 = vmatprep.subr.mxu0 0.0
      %363 = vmatpush1.msra.mxu0 0.0
      %364 = vmatprep.subr.mxu0 0.0
      %365 = vmatpush1.msra.mxu0 0.0
      %366 = vmatprep.subr.mxu0 0.0
      %367 = vmatpush1.msra.mxu0 0.0
      %368 = vmatprep.subr.mxu0 0.0
      %369 = vmatpush1.msra.mxu0 0.0
      %370 = vmatprep.subr.mxu0 0.0
      %371 = vmatpush1.msra.mxu0 0.0
      %372 = vmatprep.subr.mxu0 0.0
      %373 = vmatpush1.msra.mxu0 0.0
      %374 = vmatprep.subr.mxu0 0.0
      %375 = vmatpush1.msra.mxu0 0.0
      %376 = vmatprep.subr.mxu0 0.0
      %377 = vmatpush1.msra.mxu0 0.0
      %378 = vmatprep.subr.mxu0 0.0
      %379 = vmatpush1.msra.mxu0 0.0
      %380 = vmatprep.subr.mxu0 0.0
      %381 = vmatpush1.msra.mxu0 0.0
      %382 = vmatprep.subr.mxu0 0.0
      %383 = vmatpush1.msra.mxu0 0.0
      %384 = vmatprep.subr.mxu0 0.0
      %385 = vmatpush1.msra.mxu0 0.0
      %386 = vmatprep.subr.mxu0 0.0
      %387 = vmatpush1.msra.mxu0 0.0
      %388 = vmatprep.mubr.f32.mxu0 0.0
      %389 = vmatmul.mubr.f32.gmra.mrb[0].mxu0 %v244
      %v390 = vpop.f32.mrb[0].mxu0
      %v391 = vadd.f32 0.0, %v390
      %v392 = vpop.f32.mrb[0].mxu0
      %393 = vdwg.mxu0
      %v395 = vsel %vm242, %v227, 0
      %v397 = vsel %vm246, %v225, 0
      %v399 = vsel %vm246, %v232, 0
      %v401 = vsel %vm246, %v226, 0
      %403 = vmatprep.subr.mxu0 %v399
      %404 = vmatpush1.msra.mxu0 %v397
      %405 = vmatprep.subr.mxu0 0.0
      %406 = vmatpush1.msra.mxu0 0.0
      %407 = vmatprep.subr.mxu0 0.0
      %408 = vmatpush1.msra.mxu0 0.0
      %409 = vmatprep.subr.mxu0 0.0
      %410 = vmatpush1.msra.mxu0 0.0
      %411 = vmatprep.subr.mxu0 0.0
      %412 = vmatpush1.msra.mxu0 0.0
      %413 = vmatprep.subr.mxu0 0.0
      %414 = vmatpush1.msra.mxu0 0.0
      %415 = vmatprep.subr.mxu0 0.0
      %416 = vmatpush1.msra.mxu0 0.0
      %417 = vmatprep.subr.mxu0 0.0
      %418 = vmatpush1.msra.mxu0 0.0
      %419 = vmatprep.subr.mxu0 0.0
      %420 = vmatpush1.msra.mxu0 0.0
      %421 = vmatprep.subr.mxu0 0.0
      %422 = vmatpush1.msra.mxu0 0.0
      %423 = vmatprep.subr.mxu0 0.0
      %424 = vmatpush1.msra.mxu0 0.0
      %425 = vmatprep.subr.mxu0 0.0
      %426 = vmatpush1.msra.mxu0 0.0
      %427 = vmatprep.subr.mxu0 0.0
      %428 = vmatpush1.msra.mxu0 0.0
      %429 = vmatprep.subr.mxu0 0.0
      %430 = vmatpush1.msra.mxu0 0.0
      %431 = vmatprep.subr.mxu0 0.0
      %432 = vmatpush1.msra.mxu0 0.0
      %433 = vmatprep.subr.mxu0 0.0
      %434 = vmatpush1.msra.mxu0 0.0
      %435 = vmatprep.subr.mxu0 0.0
      %436 = vmatpush1.msra.mxu0 0.0
      %437 = vmatprep.subr.mxu0 0.0
      %438 = vmatpush1.msra.mxu0 0.0
      %439 = vmatprep.subr.mxu0 0.0
      %440 = vmatpush1.msra.mxu0 0.0
      %441 = vmatprep.subr.mxu0 0.0
      %442 = vmatpush1.msra.mxu0 0.0
      %443 = vmatprep.subr.mxu0 0.0
      %444 = vmatpush1.msra.mxu0 0.0
      %445 = vmatprep.subr.mxu0 0.0
      %446 = vmatpush1.msra.mxu0 0.0
      %447 = vmatprep.subr.mxu0 0.0
      %448 = vmatpush1.msra.mxu0 0.0
      %449 = vmatprep.subr.mxu0 0.0
      %450 = vmatpush1.msra.mxu0 0.0
      %451 = vmatprep.subr.mxu0 0.0
      %452 = vmatpush1.msra.mxu0 0.0
      %453 = vmatprep.subr.mxu0 0.0
      %454 = vmatpush1.msra.mxu0 0.0
      %455 = vmatprep.subr.mxu0 0.0
      %456 = vmatpush1.msra.mxu0 0.0
      %457 = vmatprep.subr.mxu0 0.0
      %458 = vmatpush1.msra.mxu0 0.0
      %459 = vmatprep.subr.mxu0 0.0
      %460 = vmatpush1.msra.mxu0 0.0
      %461 = vmatprep.subr.mxu0 0.0
      %462 = vmatpush1.msra.mxu0 0.0
      %463 = vmatprep.subr.mxu0 0.0
      %464 = vmatpush1.msra.mxu0 0.0
      %465 = vmatprep.subr.mxu0 0.0
      %466 = vmatpush1.msra.mxu0 0.0
      %467 = vmatprep.mubr.f32.mxu0 0.0
      %468 = vmatmul.mubr.f32.gmra.mrb[0].mxu0 %v395
      %v469 = vpop.f32.mrb[0].mxu0
      %v470 = vadd.f32 %v320, %v469
      %v471 = vpop.f32.mrb[0].mxu0
      %v472 = vadd.f32 %v322, %v471
      %473 = vdwg.mxu0
      %474 = vmatprep.subr.mxu0 0.0
      %475 = vmatpush1.msra.mxu0 %v401
      %476 = vmatprep.subr.mxu0 0.0
      %477 = vmatpush1.msra.mxu0 0.0
      %478 = vmatprep.subr.mxu0 0.0
      %479 = vmatpush1.msra.mxu0 0.0
      %480 = vmatprep.subr.mxu0 0.0
      %481 = vmatpush1.msra.mxu0 0.0
      %482 = vmatprep.subr.mxu0 0.0
      %483 = vmatpush1.msra.mxu0 0.0
      %484 = vmatprep.subr.mxu0 0.0
      %485 = vmatpush1.msra.mxu0 0.0
      %486 = vmatprep.subr.mxu0 0.0
      %487 = vmatpush1.msra.mxu0 0.0
      %488 = vmatprep.subr.mxu0 0.0
      %489 = vmatpush1.msra.mxu0 0.0
      %490 = vmatprep.subr.mxu0 0.0
      %491 = vmatpush1.msra.mxu0 0.0
      %492 = vmatprep.subr.mxu0 0.0
      %493 = vmatpush1.msra.mxu0 0.0
      %494 = vmatprep.subr.mxu0 0.0
      %495 = vmatpush1.msra.mxu0 0.0
      %496 = vmatprep.subr.mxu0 0.0
      %497 = vmatpush1.msra.mxu0 0.0
      %498 = vmatprep.subr.mxu0 0.0
      %499 = vmatpush1.msra.mxu0 0.0
      %500 = vmatprep.subr.mxu0 0.0
      %501 = vmatpush1.msra.mxu0 0.0
      %502 = vmatprep.subr.mxu0 0.0
      %503 = vmatpush1.msra.mxu0 0.0
      %504 = vmatprep.subr.mxu0 0.0
      %505 = vmatpush1.msra.mxu0 0.0
      %506 = vmatprep.subr.mxu0 0.0
      %507 = vmatpush1.msra.mxu0 0.0
      %508 = vmatprep.subr.mxu0 0.0
      %509 = vmatpush1.msra.mxu0 0.0
      %510 = vmatprep.subr.mxu0 0.0
      %511 = vmatpush1.msra.mxu0 0.0
      %512 = vmatprep.subr.mxu0 0.0
      %513 = vmatpush1.msra.mxu0 0.0
      %514 = vmatprep.subr.mxu0 0.0
      %515 = vmatpush1.msra.mxu0 0.0
      %516 = vmatprep.subr.mxu0 0.0
      %517 = vmatpush1.msra.mxu0 0.0
      %518 = vmatprep.subr.mxu0 0.0
      %519 = vmatpush1.msra.mxu0 0.0
      %520 = vmatprep.subr.mxu0 0.0
      %521 = vmatpush1.msra.mxu0 0.0
      %522 = vmatprep.subr.mxu0 0.0
      %523 = vmatpush1.msra.mxu0 0.0
      %524 = vmatprep.subr.mxu0 0.0
      %525 = vmatpush1.msra.mxu0 0.0
      %526 = vmatprep.subr.mxu0 0.0
      %527 = vmatpush1.msra.mxu0 0.0
      %528 = vmatprep.subr.mxu0 0.0
      %529 = vmatpush1.msra.mxu0 0.0
      %530 = vmatprep.subr.mxu0 0.0
      %531 = vmatpush1.msra.mxu0 0.0
      %532 = vmatprep.subr.mxu0 0.0
      %533 = vmatpush1.msra.mxu0 0.0
      %534 = vmatprep.subr.mxu0 0.0
      %535 = vmatpush1.msra.mxu0 0.0
      %536 = vmatprep.subr.mxu0 0.0
      %537 = vmatpush1.msra.mxu0 0.0
      %538 = vmatprep.mubr.f32.mxu0 0.0
      %539 = vmatmul.mubr.f32.gmra.mrb[0].mxu0 %v395
      %v540 = vpop.f32.mrb[0].mxu0
      %v541 = vadd.f32 %v391, %v540
      %v542 = vpop.f32.mrb[0].mxu0
      %543 = vdwg.mxu0
      %s544 = scalar_lea.vmem %s1, 16
      %v545 = vld [vmem:[%s544] sm:$0xff]
      %546 = vrot.lane.b32.xlu0 %v225, 126
      %v547 = vpop.permute.xlu0 %546
      %548 = vrot.lane.b32.xlu0 %v232, 126
      %v549 = vpop.permute.xlu0 %548
      %550 = vrot.lane.b32.xlu0 %v226, 126
      %v551 = vpop.permute.xlu0 %550
      %vm552 = vcmask 1031168
      %v553 = vsel %vm552, %v547, %v549
      %v554 = vsel %vm552, %v549, %v551
      %v556 = vsel %vm242, %v545, 0
      %v558 = vsel %vm246, %v553, 0
      %v560 = vsel %vm246, %v554, 0
      %v562 = vsel %vm246, %v551, 0
      %564 = vmatprep.subr.mxu0 %v560
      %565 = vmatpush1.msra.mxu0 %v558
      %566 = vmatprep.subr.mxu0 0.0
      %567 = vmatpush1.msra.mxu0 0.0
      %568 = vmatprep.subr.mxu0 0.0
      %569 = vmatpush1.msra.mxu0 0.0
      %570 = vmatprep.subr.mxu0 0.0
      %571 = vmatpush1.msra.mxu0 0.0
      %572 = vmatprep.subr.mxu0 0.0
      %573 = vmatpush1.msra.mxu0 0.0
      %574 = vmatprep.subr.mxu0 0.0
      %575 = vmatpush1.msra.mxu0 0.0
      %576 = vmatprep.subr.mxu0 0.0
      %577 = vmatpush1.msra.mxu0 0.0
      %578 = vmatprep.subr.mxu0 0.0
      %579 = vmatpush1.msra.mxu0 0.0
      %580 = vmatprep.subr.mxu0 0.0
      %581 = vmatpush1.msra.mxu0 0.0
      %582 = vmatprep.subr.mxu0 0.0
      %583 = vmatpush1.msra.mxu0 0.0
      %584 = vmatprep.subr.mxu0 0.0
      %585 = vmatpush1.msra.mxu0 0.0
      %586 = vmatprep.subr.mxu0 0.0
      %587 = vmatpush1.msra.mxu0 0.0
      %588 = vmatprep.subr.mxu0 0.0
      %589 = vmatpush1.msra.mxu0 0.0
      %590 = vmatprep.subr.mxu0 0.0
      %591 = vmatpush1.msra.mxu0 0.0
      %592 = vmatprep.subr.mxu0 0.0
      %593 = vmatpush1.msra.mxu0 0.0
      %594 = vmatprep.subr.mxu0 0.0
      %595 = vmatpush1.msra.mxu0 0.0
      %596 = vmatprep.subr.mxu0 0.0
      %597 = vmatpush1.msra.mxu0 0.0
      %598 = vmatprep.subr.mxu0 0.0
      %599 = vmatpush1.msra.mxu0 0.0
      %600 = vmatprep.subr.mxu0 0.0
      %601 = vmatpush1.msra.mxu0 0.0
      %602 = vmatprep.subr.mxu0 0.0
      %603 = vmatpush1.msra.mxu0 0.0
      %604 = vmatprep.subr.mxu0 0.0
      %605 = vmatpush1.msra.mxu0 0.0
      %606 = vmatprep.subr.mxu0 0.0
      %607 = vmatpush1.msra.mxu0 0.0
      %608 = vmatprep.subr.mxu0 0.0
      %609 = vmatpush1.msra.mxu0 0.0
      %610 = vmatprep.subr.mxu0 0.0
      %611 = vmatpush1.msra.mxu0 0.0
      %612 = vmatprep.subr.mxu0 0.0
      %613 = vmatpush1.msra.mxu0 0.0
      %614 = vmatprep.subr.mxu0 0.0
      %615 = vmatpush1.msra.mxu0 0.0
      %616 = vmatprep.subr.mxu0 0.0
      %617 = vmatpush1.msra.mxu0 0.0
      %618 = vmatprep.subr.mxu0 0.0
      %619 = vmatpush1.msra.mxu0 0.0
      %620 = vmatprep.subr.mxu0 0.0
      %621 = vmatpush1.msra.mxu0 0.0
      %622 = vmatprep.subr.mxu0 0.0
      %623 = vmatpush1.msra.mxu0 0.0
      %624 = vmatprep.subr.mxu0 0.0
      %625 = vmatpush1.msra.mxu0 0.0
      %626 = vmatprep.subr.mxu0 0.0
      %627 = vmatpush1.msra.mxu0 0.0
      %628 = vmatprep.mubr.f32.mxu0 0.0
      %629 = vmatmul.mubr.f32.gmra.mrb[0].mxu0 %v556
      %v630 = vpop.f32.mrb[0].mxu0
      %v631 = vadd.f32 0.0, %v630
      %v632 = vpop.f32.mrb[0].mxu0
      %v633 = vadd.f32 0.0, %v632
      %634 = vdwg.mxu0
      %635 = vmatprep.subr.mxu0 0.0
      %636 = vmatpush1.msra.mxu0 %v562
      %637 = vmatprep.subr.mxu0 0.0
      %638 = vmatpush1.msra.mxu0 0.0
      %639 = vmatprep.subr.mxu0 0.0
      %640 = vmatpush1.msra.mxu0 0.0
      %641 = vmatprep.subr.mxu0 0.0
      %642 = vmatpush1.msra.mxu0 0.0
      %643 = vmatprep.subr.mxu0 0.0
      %644 = vmatpush1.msra.mxu0 0.0
      %645 = vmatprep.subr.mxu0 0.0
      %646 = vmatpush1.msra.mxu0 0.0
      %647 = vmatprep.subr.mxu0 0.0
      %648 = vmatpush1.msra.mxu0 0.0
      %649 = vmatprep.subr.mxu0 0.0
      %650 = vmatpush1.msra.mxu0 0.0
      %651 = vmatprep.subr.mxu0 0.0
      %652 = vmatpush1.msra.mxu0 0.0
      %653 = vmatprep.subr.mxu0 0.0
      %654 = vmatpush1.msra.mxu0 0.0
      %655 = vmatprep.subr.mxu0 0.0
      %656 = vmatpush1.msra.mxu0 0.0
      %657 = vmatprep.subr.mxu0 0.0
      %658 = vmatpush1.msra.mxu0 0.0
      %659 = vmatprep.subr.mxu0 0.0
      %660 = vmatpush1.msra.mxu0 0.0
      %661 = vmatprep.subr.mxu0 0.0
      %662 = vmatpush1.msra.mxu0 0.0
      %663 = vmatprep.subr.mxu0 0.0
      %664 = vmatpush1.msra.mxu0 0.0
      %665 = vmatprep.subr.mxu0 0.0
      %666 = vmatpush1.msra.mxu0 0.0
      %667 = vmatprep.subr.mxu0 0.0
      %668 = vmatpush1.msra.mxu0 0.0
      %669 = vmatprep.subr.mxu0 0.0
      %670 = vmatpush1.msra.mxu0 0.0
      %671 = vmatprep.subr.mxu0 0.0
      %672 = vmatpush1.msra.mxu0 0.0
      %673 = vmatprep.subr.mxu0 0.0
      %674 = vmatpush1.msra.mxu0 0.0
      %675 = vmatprep.subr.mxu0 0.0
      %676 = vmatpush1.msra.mxu0 0.0
      %677 = vmatprep.subr.mxu0 0.0
      %678 = vmatpush1.msra.mxu0 0.0
      %679 = vmatprep.subr.mxu0 0.0
      %680 = vmatpush1.msra.mxu0 0.0
      %681 = vmatprep.subr.mxu0 0.0
      %682 = vmatpush1.msra.mxu0 0.0
      %683 = vmatprep.subr.mxu0 0.0
      %684 = vmatpush1.msra.mxu0 0.0
      %685 = vmatprep.subr.mxu0 0.0
      %686 = vmatpush1.msra.mxu0 0.0
      %687 = vmatprep.subr.mxu0 0.0
      %688 = vmatpush1.msra.mxu0 0.0
      %689 = vmatprep.subr.mxu0 0.0
      %690 = vmatpush1.msra.mxu0 0.0
      %691 = vmatprep.subr.mxu0 0.0
      %692 = vmatpush1.msra.mxu0 0.0
      %693 = vmatprep.subr.mxu0 0.0
      %694 = vmatpush1.msra.mxu0 0.0
      %695 = vmatprep.subr.mxu0 0.0
      %696 = vmatpush1.msra.mxu0 0.0
      %697 = vmatprep.subr.mxu0 0.0
      %698 = vmatpush1.msra.mxu0 0.0
      %699 = vmatprep.mubr.f32.mxu0 0.0
      %700 = vmatmul.mubr.f32.gmra.mrb[0].mxu0 %v556
      %v701 = vpop.f32.mrb[0].mxu0
      %v702 = vadd.f32 0.0, %v701
      %v703 = vpop.f32.mrb[0].mxu0
      %704 = vdwg.mxu0
      %v705 = vadd.f32 %v470, %v631
      %v706 = vadd.f32 %v472, %v633
      %v707 = vadd.f32 %v541, %v702
      %s708 = scalar_lea.vmem %s1, 24
      %v709 = vld [vmem:[%s708] sm:$0xff]
      %710 = vrot.lane.b32.xlu0 %v225, 110
      %v711 = vpop.permute.xlu0 %710
      %712 = vrot.lane.b32.xlu0 %v232, 110
      %v713 = vpop.permute.xlu0 %712
      %714 = vrot.lane.b32.xlu0 %v226, 110
      %v715 = vpop.permute.xlu0 %714
      %vm716 = vcmask 900096
      %v717 = vsel %vm716, %v711, %v713
      %v718 = vsel %vm716, %v713, %v715
      %v720 = vsel %vm242, %v709, 0
      %v722 = vsel %vm246, %v717, 0
      %v724 = vsel %vm246, %v718, 0
      %v726 = vsel %vm246, %v715, 0
      %728 = vmatprep.subr.mxu0 %v724
      %729 = vmatpush1.msra.mxu0 %v722
      %730 = vmatprep.subr.mxu0 0.0
      %731 = vmatpush1.msra.mxu0 0.0
      %732 = vmatprep.subr.mxu0 0.0
      %733 = vmatpush1.msra.mxu0 0.0
      %734 = vmatprep.subr.mxu0 0.0
      %735 = vmatpush1.msra.mxu0 0.0
      %736 = vmatprep.subr.mxu0 0.0
      %737 = vmatpush1.msra.mxu0 0.0
      %738 = vmatprep.subr.mxu0 0.0
      %739 = vmatpush1.msra.mxu0 0.0
      %740 = vmatprep.subr.mxu0 0.0
      %741 = vmatpush1.msra.mxu0 0.0
      %742 = vmatprep.subr.mxu0 0.0
      %743 = vmatpush1.msra.mxu0 0.0
      %744 = vmatprep.subr.mxu0 0.0
      %745 = vmatpush1.msra.mxu0 0.0
      %746 = vmatprep.subr.mxu0 0.0
      %747 = vmatpush1.msra.mxu0 0.0
      %748 = vmatprep.subr.mxu0 0.0
      %749 = vmatpush1.msra.mxu0 0.0
      %750 = vmatprep.subr.mxu0 0.0
      %751 = vmatpush1.msra.mxu0 0.0
      %752 = vmatprep.subr.mxu0 0.0
      %753 = vmatpush1.msra.mxu0 0.0
      %754 = vmatprep.subr.mxu0 0.0
      %755 = vmatpush1.msra.mxu0 0.0
      %756 = vmatprep.subr.mxu0 0.0
      %757 = vmatpush1.msra.mxu0 0.0
      %758 = vmatprep.subr.mxu0 0.0
      %759 = vmatpush1.msra.mxu0 0.0
      %760 = vmatprep.subr.mxu0 0.0
      %761 = vmatpush1.msra.mxu0 0.0
      %762 = vmatprep.subr.mxu0 0.0
      %763 = vmatpush1.msra.mxu0 0.0
      %764 = vmatprep.subr.mxu0 0.0
      %765 = vmatpush1.msra.mxu0 0.0
      %766 = vmatprep.subr.mxu0 0.0
      %767 = vmatpush1.msra.mxu0 0.0
      %768 = vmatprep.subr.mxu0 0.0
      %769 = vmatpush1.msra.mxu0 0.0
      %770 = vmatprep.subr.mxu0 0.0
      %771 = vmatpush1.msra.mxu0 0.0
      %772 = vmatprep.subr.mxu0 0.0
      %773 = vmatpush1.msra.mxu0 0.0
      %774 = vmatprep.subr.mxu0 0.0
      %775 = vmatpush1.msra.mxu0 0.0
      %776 = vmatprep.subr.mxu0 0.0
      %777 = vmatpush1.msra.mxu0 0.0
      %778 = vmatprep.subr.mxu0 0.0
      %779 = vmatpush1.msra.mxu0 0.0
      %780 = vmatprep.subr.mxu0 0.0
      %781 = vmatpush1.msra.mxu0 0.0
      %782 = vmatprep.subr.mxu0 0.0
      %783 = vmatpush1.msra.mxu0 0.0
      %784 = vmatprep.subr.mxu0 0.0
      %785 = vmatpush1.msra.mxu0 0.0
      %786 = vmatprep.subr.mxu0 0.0
      %787 = vmatpush1.msra.mxu0 0.0
      %788 = vmatprep.subr.mxu0 0.0
      %789 = vmatpush1.msra.mxu0 0.0
      %790 = vmatprep.subr.mxu0 0.0
      %791 = vmatpush1.msra.mxu0 0.0
      %792 = vmatprep.mubr.f32.mxu0 0.0
      %793 = vmatmul.mubr.f32.gmra.mrb[0].mxu0 %v720
      %v794 = vpop.f32.mrb[0].mxu0
      %v795 = vadd.f32 0.0, %v794
      %v796 = vpop.f32.mrb[0].mxu0
      %v797 = vadd.f32 0.0, %v796
      %798 = vdwg.mxu0
      %799 = vmatprep.subr.mxu0 0.0
      %800 = vmatpush1.msra.mxu0 %v726
      %801 = vmatprep.subr.mxu0 0.0
      %802 = vmatpush1.msra.mxu0 0.0
      %803 = vmatprep.subr.mxu0 0.0
      %804 = vmatpush1.msra.mxu0 0.0
      %805 = vmatprep.subr.mxu0 0.0
      %806 = vmatpush1.msra.mxu0 0.0
      %807 = vmatprep.subr.mxu0 0.0
      %808 = vmatpush1.msra.mxu0 0.0
      %809 = vmatprep.subr.mxu0 0.0
      %810 = vmatpush1.msra.mxu0 0.0
      %811 = vmatprep.subr.mxu0 0.0
      %812 = vmatpush1.msra.mxu0 0.0
      %813 = vmatprep.subr.mxu0 0.0
      %814 = vmatpush1.msra.mxu0 0.0
      %815 = vmatprep.subr.mxu0 0.0
      %816 = vmatpush1.msra.mxu0 0.0
      %817 = vmatprep.subr.mxu0 0.0
      %818 = vmatpush1.msra.mxu0 0.0
      %819 = vmatprep.subr.mxu0 0.0
      %820 = vmatpush1.msra.mxu0 0.0
      %821 = vmatprep.subr.mxu0 0.0
      %822 = vmatpush1.msra.mxu0 0.0
      %823 = vmatprep.subr.mxu0 0.0
      %824 = vmatpush1.msra.mxu0 0.0
      %825 = vmatprep.subr.mxu0 0.0
      %826 = vmatpush1.msra.mxu0 0.0
      %827 = vmatprep.subr.mxu0 0.0
      %828 = vmatpush1.msra.mxu0 0.0
      %829 = vmatprep.subr.mxu0 0.0
      %830 = vmatpush1.msra.mxu0 0.0
      %831 = vmatprep.subr.mxu0 0.0
      %832 = vmatpush1.msra.mxu0 0.0
      %833 = vmatprep.subr.mxu0 0.0
      %834 = vmatpush1.msra.mxu0 0.0
      %835 = vmatprep.subr.mxu0 0.0
      %836 = vmatpush1.msra.mxu0 0.0
      %837 = vmatprep.subr.mxu0 0.0
      %838 = vmatpush1.msra.mxu0 0.0
      %839 = vmatprep.subr.mxu0 0.0
      %840 = vmatpush1.msra.mxu0 0.0
      %841 = vmatprep.subr.mxu0 0.0
      %842 = vmatpush1.msra.mxu0 0.0
      %843 = vmatprep.subr.mxu0 0.0
      %844 = vmatpush1.msra.mxu0 0.0
      %845 = vmatprep.subr.mxu0 0.0
      %846 = vmatpush1.msra.mxu0 0.0
      %847 = vmatprep.subr.mxu0 0.0
      %848 = vmatpush1.msra.mxu0 0.0
      %849 = vmatprep.subr.mxu0 0.0
      %850 = vmatpush1.msra.mxu0 0.0
      %851 = vmatprep.subr.mxu0 0.0
      %852 = vmatpush1.msra.mxu0 0.0
      %853 = vmatprep.subr.mxu0 0.0
      %854 = vmatpush1.msra.mxu0 0.0
      %855 = vmatprep.subr.mxu0 0.0
      %856 = vmatpush1.msra.mxu0 0.0
      %857 = vmatprep.subr.mxu0 0.0
      %858 = vmatpush1.msra.mxu0 0.0
      %859 = vmatprep.subr.mxu0 0.0
      %860 = vmatpush1.msra.mxu0 0.0
      %861 = vmatprep.subr.mxu0 0.0
      %862 = vmatpush1.msra.mxu0 0.0
      %863 = vmatprep.mubr.f32.mxu0 0.0
      %864 = vmatmul.mubr.f32.gmra.mrb[0].mxu0 %v720
      %v865 = vpop.f32.mrb[0].mxu0
      %v866 = vadd.f32 0.0, %v865
      %v867 = vpop.f32.mrb[0].mxu0
      %868 = vdwg.mxu0
      %v869 = vadd.f32 %v705, %v795
      %v870 = vadd.f32 %v706, %v797
      %v871 = vadd.f32 %v707, %v866
      %s872 = scalar_lea.vmem %s1, 32
      %v873 = vld [vmem:[%s872] sm:$0xff]
      %874 = vrot.lane.b32.xlu0 %v225, 109
      %v875 = vpop.permute.xlu0 %874
      %876 = vrot.lane.b32.xlu0 %v232, 109
      %v877 = vpop.permute.xlu0 %876
      %878 = vrot.lane.b32.xlu0 %v226, 109
      %v879 = vpop.permute.xlu0 %878
      %vm880 = vcmask 891904
      %v881 = vsel %vm880, %v875, %v877
      %v882 = vsel %vm880, %v877, %v879
      %v884 = vsel %vm242, %v873, 0
      %v886 = vsel %vm246, %v881, 0
      %v888 = vsel %vm246, %v882, 0
      %v890 = vsel %vm246, %v879, 0
      %892 = vmatprep.subr.mxu0 %v888
      %893 = vmatpush1.msra.mxu0 %v886
      %894 = vmatprep.subr.mxu0 0.0
      %895 = vmatpush1.msra.mxu0 0.0
      %896 = vmatprep.subr.mxu0 0.0
      %897 = vmatpush1.msra.mxu0 0.0
      %898 = vmatprep.subr.mxu0 0.0
      %899 = vmatpush1.msra.mxu0 0.0
      %900 = vmatprep.subr.mxu0 0.0
      %901 = vmatpush1.msra.mxu0 0.0
      %902 = vmatprep.subr.mxu0 0.0
      %903 = vmatpush1.msra.mxu0 0.0
      %904 = vmatprep.subr.mxu0 0.0
      %905 = vmatpush1.msra.mxu0 0.0
      %906 = vmatprep.subr.mxu0 0.0
      %907 = vmatpush1.msra.mxu0 0.0
      %908 = vmatprep.subr.mxu0 0.0
      %909 = vmatpush1.msra.mxu0 0.0
      %910 = vmatprep.subr.mxu0 0.0
      %911 = vmatpush1.msra.mxu0 0.0
      %912 = vmatprep.subr.mxu0 0.0
      %913 = vmatpush1.msra.mxu0 0.0
      %914 = vmatprep.subr.mxu0 0.0
      %915 = vmatpush1.msra.mxu0 0.0
      %916 = vmatprep.subr.mxu0 0.0
      %917 = vmatpush1.msra.mxu0 0.0
      %918 = vmatprep.subr.mxu0 0.0
      %919 = vmatpush1.msra.mxu0 0.0
      %920 = vmatprep.subr.mxu0 0.0
      %921 = vmatpush1.msra.mxu0 0.0
      %922 = vmatprep.subr.mxu0 0.0
      %923 = vmatpush1.msra.mxu0 0.0
      %924 = vmatprep.subr.mxu0 0.0
      %925 = vmatpush1.msra.mxu0 0.0
      %926 = vmatprep.subr.mxu0 0.0
      %927 = vmatpush1.msra.mxu0 0.0
      %928 = vmatprep.subr.mxu0 0.0
      %929 = vmatpush1.msra.mxu0 0.0
      %930 = vmatprep.subr.mxu0 0.0
      %931 = vmatpush1.msra.mxu0 0.0
      %932 = vmatprep.subr.mxu0 0.0
      %933 = vmatpush1.msra.mxu0 0.0
      %934 = vmatprep.subr.mxu0 0.0
      %935 = vmatpush1.msra.mxu0 0.0
      %936 = vmatprep.subr.mxu0 0.0
      %937 = vmatpush1.msra.mxu0 0.0
      %938 = vmatprep.subr.mxu0 0.0
      %939 = vmatpush1.msra.mxu0 0.0
      %940 = vmatprep.subr.mxu0 0.0
      %941 = vmatpush1.msra.mxu0 0.0
      %942 = vmatprep.subr.mxu0 0.0
      %943 = vmatpush1.msra.mxu0 0.0
      %944 = vmatprep.subr.mxu0 0.0
      %945 = vmatpush1.msra.mxu0 0.0
      %946 = vmatprep.subr.mxu0 0.0
      %947 = vmatpush1.msra.mxu0 0.0
      %948 = vmatprep.subr.mxu0 0.0
      %949 = vmatpush1.msra.mxu0 0.0
      %950 = vmatprep.subr.mxu0 0.0
      %951 = vmatpush1.msra.mxu0 0.0
      %952 = vmatprep.subr.mxu0 0.0
      %953 = vmatpush1.msra.mxu0 0.0
      %954 = vmatprep.subr.mxu0 0.0
      %955 = vmatpush1.msra.mxu0 0.0
      %956 = vmatprep.mubr.f32.mxu0 0.0
      %957 = vmatmul.mubr.f32.gmra.mrb[0].mxu0 %v884
      %v958 = vpop.f32.mrb[0].mxu0
      %v959 = vadd.f32 0.0, %v958
      %v960 = vpop.f32.mrb[0].mxu0
      %v961 = vadd.f32 0.0, %v960
      %962 = vdwg.mxu0
      %963 = vmatprep.subr.mxu0 0.0
      %964 = vmatpush1.msra.mxu0 %v890
      %965 = vmatprep.subr.mxu0 0.0
      %966 = vmatpush1.msra.mxu0 0.0
      %967 = vmatprep.subr.mxu0 0.0
      %968 = vmatpush1.msra.mxu0 0.0
      %969 = vmatprep.subr.mxu0 0.0
      %970 = vmatpush1.msra.mxu0 0.0
      %971 = vmatprep.subr.mxu0 0.0
      %972 = vmatpush1.msra.mxu0 0.0
      %973 = vmatprep.subr.mxu0 0.0
      %974 = vmatpush1.msra.mxu0 0.0
      %975 = vmatprep.subr.mxu0 0.0
      %976 = vmatpush1.msra.mxu0 0.0
      %977 = vmatprep.subr.mxu0 0.0
      %978 = vmatpush1.msra.mxu0 0.0
      %979 = vmatprep.subr.mxu0 0.0
      %980 = vmatpush1.msra.mxu0 0.0
      %981 = vmatprep.subr.mxu0 0.0
      %982 = vmatpush1.msra.mxu0 0.0
      %983 = vmatprep.subr.mxu0 0.0
      %984 = vmatpush1.msra.mxu0 0.0
      %985 = vmatprep.subr.mxu0 0.0
      %986 = vmatpush1.msra.mxu0 0.0
      %987 = vmatprep.subr.mxu0 0.0
      %988 = vmatpush1.msra.mxu0 0.0
      %989 = vmatprep.subr.mxu0 0.0
      %990 = vmatpush1.msra.mxu0 0.0
      %991 = vmatprep.subr.mxu0 0.0
      %992 = vmatpush1.msra.mxu0 0.0
      %993 = vmatprep.subr.mxu0 0.0
      %994 = vmatpush1.msra.mxu0 0.0
      %995 = vmatprep.subr.mxu0 0.0
      %996 = vmatpush1.msra.mxu0 0.0
      %997 = vmatprep.subr.mxu0 0.0
      %998 = vmatpush1.msra.mxu0 0.0
      %999 = vmatprep.subr.mxu0 0.0
      %1000 = vmatpush1.msra.mxu0 0.0
      %1001 = vmatprep.subr.mxu0 0.0
      %1002 = vmatpush1.msra.mxu0 0.0
      %1003 = vmatprep.subr.mxu0 0.0
      %1004 = vmatpush1.msra.mxu0 0.0
      %1005 = vmatprep.subr.mxu0 0.0
      %1006 = vmatpush1.msra.mxu0 0.0
      %1007 = vmatprep.subr.mxu0 0.0
      %1008 = vmatpush1.msra.mxu0 0.0
      %1009 = vmatprep.subr.mxu0 0.0
      %1010 = vmatpush1.msra.mxu0 0.0
      %1011 = vmatprep.subr.mxu0 0.0
      %1012 = vmatpush1.msra.mxu0 0.0
      %1013 = vmatprep.subr.mxu0 0.0
      %1014 = vmatpush1.msra.mxu0 0.0
      %1015 = vmatprep.subr.mxu0 0.0
      %1016 = vmatpush1.msra.mxu0 0.0
      %1017 = vmatprep.subr.mxu0 0.0
      %1018 = vmatpush1.msra.mxu0 0.0
      %1019 = vmatprep.subr.mxu0 0.0
      %1020 = vmatpush1.msra.mxu0 0.0
      %1021 = vmatprep.subr.mxu0 0.0
      %1022 = vmatpush1.msra.mxu0 0.0
      %1023 = vmatprep.subr.mxu0 0.0
      %1024 = vmatpush1.msra.mxu0 0.0
      %1025 = vmatprep.subr.mxu0 0.0
      %1026 = vmatpush1.msra.mxu0 0.0
      %1027 = vmatprep.mubr.f32.mxu0 0.0
      %1028 = vmatmul.mubr.f32.gmra.mrb[0].mxu0 %v884
      %v1029 = vpop.f32.mrb[0].mxu0
      %v1030 = vadd.f32 0.0, %v1029
      %v1031 = vpop.f32.mrb[0].mxu0
      %1032 = vdwg.mxu0
      %v1033 = vadd.f32 %v869, %v959
      %v1034 = vadd.f32 %v870, %v961
      %v1035 = vadd.f32 %v871, %v1030
      %s1036 = scalar_lea.vmem %s1, 40
      %v1037 = vld [vmem:[%s1036] sm:$0xff]
      %1038 = vrot.lane.b32.xlu0 %v225, 108
      %v1039 = vpop.permute.xlu0 %1038
      %1040 = vrot.lane.b32.xlu0 %v232, 108
      %v1041 = vpop.permute.xlu0 %1040
      %1042 = vrot.lane.b32.xlu0 %v226, 108
      %v1043 = vpop.permute.xlu0 %1042
      %vm1044 = vcmask 883712
      %v1045 = vsel %vm1044, %v1039, %v1041
      %v1046 = vsel %vm1044, %v1041, %v1043
      %v1048 = vsel %vm242, %v1037, 0
      %v1050 = vsel %vm246, %v1045, 0
      %v1052 = vsel %vm246, %v1046, 0
      %v1054 = vsel %vm246, %v1043, 0
      %1056 = vmatprep.subr.mxu0 %v1052
      %1057 = vmatpush1.msra.mxu0 %v1050
      %1058 = vmatprep.subr.mxu0 0.0
      %1059 = vmatpush1.msra.mxu0 0.0
      %1060 = vmatprep.subr.mxu0 0.0
      %1061 = vmatpush1.msra.mxu0 0.0
      %1062 = vmatprep.subr.mxu0 0.0
      %1063 = vmatpush1.msra.mxu0 0.0
      %1064 = vmatprep.subr.mxu0 0.0
      %1065 = vmatpush1.msra.mxu0 0.0
      %1066 = vmatprep.subr.mxu0 0.0
      %1067 = vmatpush1.msra.mxu0 0.0
      %1068 = vmatprep.subr.mxu0 0.0
      %1069 = vmatpush1.msra.mxu0 0.0
      %1070 = vmatprep.subr.mxu0 0.0
      %1071 = vmatpush1.msra.mxu0 0.0
      %1072 = vmatprep.subr.mxu0 0.0
      %1073 = vmatpush1.msra.mxu0 0.0
      %1074 = vmatprep.subr.mxu0 0.0
      %1075 = vmatpush1.msra.mxu0 0.0
      %1076 = vmatprep.subr.mxu0 0.0
      %1077 = vmatpush1.msra.mxu0 0.0
      %1078 = vmatprep.subr.mxu0 0.0
      %1079 = vmatpush1.msra.mxu0 0.0
      %1080 = vmatprep.subr.mxu0 0.0
      %1081 = vmatpush1.msra.mxu0 0.0
      %1082 = vmatprep.subr.mxu0 0.0
      %1083 = vmatpush1.msra.mxu0 0.0
      %1084 = vmatprep.subr.mxu0 0.0
      %1085 = vmatpush1.msra.mxu0 0.0
      %1086 = vmatprep.subr.mxu0 0.0
      %1087 = vmatpush1.msra.mxu0 0.0
      %1088 = vmatprep.subr.mxu0 0.0
      %1089 = vmatpush1.msra.mxu0 0.0
      %1090 = vmatprep.subr.mxu0 0.0
      %1091 = vmatpush1.msra.mxu0 0.0
      %1092 = vmatprep.subr.mxu0 0.0
      %1093 = vmatpush1.msra.mxu0 0.0
      %1094 = vmatprep.subr.mxu0 0.0
      %1095 = vmatpush1.msra.mxu0 0.0
      %1096 = vmatprep.subr.mxu0 0.0
      %1097 = vmatpush1.msra.mxu0 0.0
      %1098 = vmatprep.subr.mxu0 0.0
      %1099 = vmatpush1.msra.mxu0 0.0
      %1100 = vmatprep.subr.mxu0 0.0
      %1101 = vmatpush1.msra.mxu0 0.0
      %1102 = vmatprep.subr.mxu0 0.0
      %1103 = vmatpush1.msra.mxu0 0.0
      %1104 = vmatprep.subr.mxu0 0.0
      %1105 = vmatpush1.msra.mxu0 0.0
      %1106 = vmatprep.subr.mxu0 0.0
      %1107 = vmatpush1.msra.mxu0 0.0
      %1108 = vmatprep.subr.mxu0 0.0
      %1109 = vmatpush1.msra.mxu0 0.0
      %1110 = vmatprep.subr.mxu0 0.0
      %1111 = vmatpush1.msra.mxu0 0.0
      %1112 = vmatprep.subr.mxu0 0.0
      %1113 = vmatpush1.msra.mxu0 0.0
      %1114 = vmatprep.subr.mxu0 0.0
      %1115 = vmatpush1.msra.mxu0 0.0
      %1116 = vmatprep.subr.mxu0 0.0
      %1117 = vmatpush1.msra.mxu0 0.0
      %1118 = vmatprep.subr.mxu0 0.0
      %1119 = vmatpush1.msra.mxu0 0.0
      %1120 = vmatprep.mubr.f32.mxu0 0.0
      %1121 = vmatmul.mubr.f32.gmra.mrb[0].mxu0 %v1048
      %v1122 = vpop.f32.mrb[0].mxu0
      %v1123 = vadd.f32 0.0, %v1122
      %v1124 = vpop.f32.mrb[0].mxu0
      %v1125 = vadd.f32 0.0, %v1124
      %1126 = vdwg.mxu0
      %1127 = vmatprep.subr.mxu0 0.0
      %1128 = vmatpush1.msra.mxu0 %v1054
      %1129 = vmatprep.subr.mxu0 0.0
      %1130 = vmatpush1.msra.mxu0 0.0
      %1131 = vmatprep.subr.mxu0 0.0
      %1132 = vmatpush1.msra.mxu0 0.0
      %1133 = vmatprep.subr.mxu0 0.0
      %1134 = vmatpush1.msra.mxu0 0.0
      %1135 = vmatprep.subr.mxu0 0.0
      %1136 = vmatpush1.msra.mxu0 0.0
      %1137 = vmatprep.subr.mxu0 0.0
      %1138 = vmatpush1.msra.mxu0 0.0
      %1139 = vmatprep.subr.mxu0 0.0
      %1140 = vmatpush1.msra.mxu0 0.0
      %1141 = vmatprep.subr.mxu0 0.0
      %1142 = vmatpush1.msra.mxu0 0.0
      %1143 = vmatprep.subr.mxu0 0.0
      %1144 = vmatpush1.msra.mxu0 0.0
      %1145 = vmatprep.subr.mxu0 0.0
      %1146 = vmatpush1.msra.mxu0 0.0
      %1147 = vmatprep.subr.mxu0 0.0
      %1148 = vmatpush1.msra.mxu0 0.0
      %1149 = vmatprep.subr.mxu0 0.0
      %1150 = vmatpush1.msra.mxu0 0.0
      %1151 = vmatprep.subr.mxu0 0.0
      %1152 = vmatpush1.msra.mxu0 0.0
      %1153 = vmatprep.subr.mxu0 0.0
      %1154 = vmatpush1.msra.mxu0 0.0
      %1155 = vmatprep.subr.mxu0 0.0
      %1156 = vmatpush1.msra.mxu0 0.0
      %1157 = vmatprep.subr.mxu0 0.0
      %1158 = vmatpush1.msra.mxu0 0.0
      %1159 = vmatprep.subr.mxu0 0.0
      %1160 = vmatpush1.msra.mxu0 0.0
      %1161 = vmatprep.subr.mxu0 0.0
      %1162 = vmatpush1.msra.mxu0 0.0
      %1163 = vmatprep.subr.mxu0 0.0
      %1164 = vmatpush1.msra.mxu0 0.0
      %1165 = vmatprep.subr.mxu0 0.0
      %1166 = vmatpush1.msra.mxu0 0.0
      %1167 = vmatprep.subr.mxu0 0.0
      %1168 = vmatpush1.msra.mxu0 0.0
      %1169 = vmatprep.subr.mxu0 0.0
      %1170 = vmatpush1.msra.mxu0 0.0
      %1171 = vmatprep.subr.mxu0 0.0
      %1172 = vmatpush1.msra.mxu0 0.0
      %1173 = vmatprep.subr.mxu0 0.0
      %1174 = vmatpush1.msra.mxu0 0.0
      %1175 = vmatprep.subr.mxu0 0.0
      %1176 = vmatpush1.msra.mxu0 0.0
      %1177 = vmatprep.subr.mxu0 0.0
      %1178 = vmatpush1.msra.mxu0 0.0
      %1179 = vmatprep.subr.mxu0 0.0
      %1180 = vmatpush1.msra.mxu0 0.0
      %1181 = vmatprep.subr.mxu0 0.0
      %1182 = vmatpush1.msra.mxu0 0.0
      %1183 = vmatprep.subr.mxu0 0.0
      %1184 = vmatpush1.msra.mxu0 0.0
      %1185 = vmatprep.subr.mxu0 0.0
      %1186 = vmatpush1.msra.mxu0 0.0
      %1187 = vmatprep.subr.mxu0 0.0
      %1188 = vmatpush1.msra.mxu0 0.0
      %1189 = vmatprep.subr.mxu0 0.0
      %1190 = vmatpush1.msra.mxu0 0.0
      %1191 = vmatprep.mubr.f32.mxu0 0.0
      %1192 = vmatmul.mubr.f32.gmra.mrb[0].mxu0 %v1048
      %v1193 = vpop.f32.mrb[0].mxu0
      %v1194 = vadd.f32 0.0, %v1193
      %v1195 = vpop.f32.mrb[0].mxu0
      %1196 = vdwg.mxu0
      %v1197 = vadd.f32 %v1033, %v1123
      %v1198 = vadd.f32 %v1034, %v1125
      %v1199 = vadd.f32 %v1035, %v1194
      %s1200 = scalar_lea.vmem %s1, 48
      %v1201 = vld [vmem:[%s1200] sm:$0xff]
      %1202 = vrot.lane.b32.xlu0 %v225, 92
      %v1203 = vpop.permute.xlu0 %1202
      %1204 = vrot.lane.b32.xlu0 %v232, 92
      %v1205 = vpop.permute.xlu0 %1204
      %1206 = vrot.lane.b32.xlu0 %v226, 92
      %v1207 = vpop.permute.xlu0 %1206
      %vm1208 = vcmask 752640
      %v1209 = vsel %vm1208, %v1203, %v1205
      %v1210 = vsel %vm1208, %v1205, %v1207
      %v1212 = vsel %vm242, %v1201, 0
      %v1214 = vsel %vm246, %v1209, 0
      %v1216 = vsel %vm246, %v1210, 0
      %v1218 = vsel %vm246, %v1207, 0
      %1220 = vmatprep.subr.mxu0 %v1216
      %1221 = vmatpush1.msra.mxu0 %v1214
      %1222 = vmatprep.subr.mxu0 0.0
      %1223 = vmatpush1.msra.mxu0 0.0
      %1224 = vmatprep.subr.mxu0 0.0
      %1225 = vmatpush1.msra.mxu0 0.0
      %1226 = vmatprep.subr.mxu0 0.0
      %1227 = vmatpush1.msra.mxu0 0.0
      %1228 = vmatprep.subr.mxu0 0.0
      %1229 = vmatpush1.msra.mxu0 0.0
      %1230 = vmatprep.subr.mxu0 0.0
      %1231 = vmatpush1.msra.mxu0 0.0
      %1232 = vmatprep.subr.mxu0 0.0
      %1233 = vmatpush1.msra.mxu0 0.0
      %1234 = vmatprep.subr.mxu0 0.0
      %1235 = vmatpush1.msra.mxu0 0.0
      %1236 = vmatprep.subr.mxu0 0.0
      %1237 = vmatpush1.msra.mxu0 0.0
      %1238 = vmatprep.subr.mxu0 0.0
      %1239 = vmatpush1.msra.mxu0 0.0
      %1240 = vmatprep.subr.mxu0 0.0
      %1241 = vmatpush1.msra.mxu0 0.0
      %1242 = vmatprep.subr.mxu0 0.0
      %1243 = vmatpush1.msra.mxu0 0.0
      %1244 = vmatprep.subr.mxu0 0.0
      %1245 = vmatpush1.msra.mxu0 0.0
      %1246 = vmatprep.subr.mxu0 0.0
      %1247 = vmatpush1.msra.mxu0 0.0
      %1248 = vmatprep.subr.mxu0 0.0
      %1249 = vmatpush1.msra.mxu0 0.0
      %1250 = vmatprep.subr.mxu0 0.0
      %1251 = vmatpush1.msra.mxu0 0.0
      %1252 = vmatprep.subr.mxu0 0.0
      %1253 = vmatpush1.msra.mxu0 0.0
      %1254 = vmatprep.subr.mxu0 0.0
      %1255 = vmatpush1.msra.mxu0 0.0
      %1256 = vmatprep.subr.mxu0 0.0
      %1257 = vmatpush1.msra.mxu0 0.0
      %1258 = vmatprep.subr.mxu0 0.0
      %1259 = vmatpush1.msra.mxu0 0.0
      %1260 = vmatprep.subr.mxu0 0.0
      %1261 = vmatpush1.msra.mxu0 0.0
      %1262 = vmatprep.subr.mxu0 0.0
      %1263 = vmatpush1.msra.mxu0 0.0
      %1264 = vmatprep.subr.mxu0 0.0
      %1265 = vmatpush1.msra.mxu0 0.0
      %1266 = vmatprep.subr.mxu0 0.0
      %1267 = vmatpush1.msra.mxu0 0.0
      %1268 = vmatprep.subr.mxu0 0.0
      %1269 = vmatpush1.msra.mxu0 0.0
      %1270 = vmatprep.subr.mxu0 0.0
      %1271 = vmatpush1.msra.mxu0 0.0
      %1272 = vmatprep.subr.mxu0 0.0
      %1273 = vmatpush1.msra.mxu0 0.0
      %1274 = vmatprep.subr.mxu0 0.0
      %1275 = vmatpush1.msra.mxu0 0.0
      %1276 = vmatprep.subr.mxu0 0.0
      %1277 = vmatpush1.msra.mxu0 0.0
      %1278 = vmatprep.subr.mxu0 0.0
      %1279 = vmatpush1.msra.mxu0 0.0
      %1280 = vmatprep.subr.mxu0 0.0
      %1281 = vmatpush1.msra.mxu0 0.0
      %1282 = vmatprep.subr.mxu0 0.0
      %1283 = vmatpush1.msra.mxu0 0.0
      %1284 = vmatprep.mubr.f32.mxu0 0.0
      %1285 = vmatmul.mubr.f32.gmra.mrb[0].mxu0 %v1212
      %v1286 = vpop.f32.mrb[0].mxu0
      %v1287 = vadd.f32 0.0, %v1286
      %v1288 = vpop.f32.mrb[0].mxu0
      %v1289 = vadd.f32 0.0, %v1288
      %1290 = vdwg.mxu0
      %1291 = vmatprep.subr.mxu0 0.0
      %1292 = vmatpush1.msra.mxu0 %v1218
      %1293 = vmatprep.subr.mxu0 0.0
      %1294 = vmatpush1.msra.mxu0 0.0
      %1295 = vmatprep.subr.mxu0 0.0
      %1296 = vmatpush1.msra.mxu0 0.0
      %1297 = vmatprep.subr.mxu0 0.0
      %1298 = vmatpush1.msra.mxu0 0.0
      %1299 = vmatprep.subr.mxu0 0.0
      %1300 = vmatpush1.msra.mxu0 0.0
      %1301 = vmatprep.subr.mxu0 0.0
      %1302 = vmatpush1.msra.mxu0 0.0
      %1303 = vmatprep.subr.mxu0 0.0
      %1304 = vmatpush1.msra.mxu0 0.0
      %1305 = vmatprep.subr.mxu0 0.0
      %1306 = vmatpush1.msra.mxu0 0.0
      %1307 = vmatprep.subr.mxu0 0.0
      %1308 = vmatpush1.msra.mxu0 0.0
      %1309 = vmatprep.subr.mxu0 0.0
      %1310 = vmatpush1.msra.mxu0 0.0
      %1311 = vmatprep.subr.mxu0 0.0
      %1312 = vmatpush1.msra.mxu0 0.0
      %1313 = vmatprep.subr.mxu0 0.0
      %1314 = vmatpush1.msra.mxu0 0.0
      %1315 = vmatprep.subr.mxu0 0.0
      %1316 = vmatpush1.msra.mxu0 0.0
      %1317 = vmatprep.subr.mxu0 0.0
      %1318 = vmatpush1.msra.mxu0 0.0
      %1319 = vmatprep.subr.mxu0 0.0
      %1320 = vmatpush1.msra.mxu0 0.0
      %1321 = vmatprep.subr.mxu0 0.0
      %1322 = vmatpush1.msra.mxu0 0.0
      %1323 = vmatprep.subr.mxu0 0.0
      %1324 = vmatpush1.msra.mxu0 0.0
      %1325 = vmatprep.subr.mxu0 0.0
      %1326 = vmatpush1.msra.mxu0 0.0
      %1327 = vmatprep.subr.mxu0 0.0
      %1328 = vmatpush1.msra.mxu0 0.0
      %1329 = vmatprep.subr.mxu0 0.0
      %1330 = vmatpush1.msra.mxu0 0.0
      %1331 = vmatprep.subr.mxu0 0.0
      %1332 = vmatpush1.msra.mxu0 0.0
      %1333 = vmatprep.subr.mxu0 0.0
      %1334 = vmatpush1.msra.mxu0 0.0
      %1335 = vmatprep.subr.mxu0 0.0
      %1336 = vmatpush1.msra.mxu0 0.0
      %1337 = vmatprep.subr.mxu0 0.0
      %1338 = vmatpush1.msra.mxu0 0.0
      %1339 = vmatprep.subr.mxu0 0.0
      %1340 = vmatpush1.msra.mxu0 0.0
      %1341 = vmatprep.subr.mxu0 0.0
      %1342 = vmatpush1.msra.mxu0 0.0
      %1343 = vmatprep.subr.mxu0 0.0
      %1344 = vmatpush1.msra.mxu0 0.0
      %1345 = vmatprep.subr.mxu0 0.0
      %1346 = vmatpush1.msra.mxu0 0.0
      %1347 = vmatprep.subr.mxu0 0.0
      %1348 = vmatpush1.msra.mxu0 0.0
      %1349 = vmatprep.subr.mxu0 0.0
      %1350 = vmatpush1.msra.mxu0 0.0
      %1351 = vmatprep.subr.mxu0 0.0
      %1352 = vmatpush1.msra.mxu0 0.0
      %1353 = vmatprep.subr.mxu0 0.0
      %1354 = vmatpush1.msra.mxu0 0.0
      %1355 = vmatprep.mubr.f32.mxu0 0.0
      %1356 = vmatmul.mubr.f32.gmra.mrb[0].mxu0 %v1212
      %v1357 = vpop.f32.mrb[0].mxu0
      %v1358 = vadd.f32 0.0, %v1357
      %v1359 = vpop.f32.mrb[0].mxu0
      %1360 = vdwg.mxu0
      %v1361 = vadd.f32 %v1197, %v1287
      %v1362 = vadd.f32 %v1198, %v1289
      %v1363 = vadd.f32 %v1199, %v1358
      %s1364 = scalar_lea.vmem %s1, 56
      %v1365 = vld [vmem:[%s1364] sm:$0xff]
      %1366 = vrot.lane.b32.xlu0 %v225, 91
      %v1367 = vpop.permute.xlu0 %1366
      %1368 = vrot.lane.b32.xlu0 %v232, 91
      %v1369 = vpop.permute.xlu0 %1368
      %1370 = vrot.lane.b32.xlu0 %v226, 91
      %v1371 = vpop.permute.xlu0 %1370
      %vm1372 = vcmask 744448
      %v1373 = vsel %vm1372, %v1367, %v1369
      %v1374 = vsel %vm1372, %v1369, %v1371
      %v1376 = vsel %vm242, %v1365, 0
      %v1378 = vsel %vm246, %v1373, 0
      %v1380 = vsel %vm246, %v1374, 0
      %v1382 = vsel %vm246, %v1371, 0
      %1384 = vmatprep.subr.mxu0 %v1380
      %1385 = vmatpush1.msra.mxu0 %v1378
      %1386 = vmatprep.subr.mxu0 0.0
      %1387 = vmatpush1.msra.mxu0 0.0
      %1388 = vmatprep.subr.mxu0 0.0
      %1389 = vmatpush1.msra.mxu0 0.0
      %1390 = vmatprep.subr.mxu0 0.0
      %1391 = vmatpush1.msra.mxu0 0.0
      %1392 = vmatprep.subr.mxu0 0.0
      %1393 = vmatpush1.msra.mxu0 0.0
      %1394 = vmatprep.subr.mxu0 0.0
      %1395 = vmatpush1.msra.mxu0 0.0
      %1396 = vmatprep.subr.mxu0 0.0
      %1397 = vmatpush1.msra.mxu0 0.0
      %1398 = vmatprep.subr.mxu0 0.0
      %1399 = vmatpush1.msra.mxu0 0.0
      %1400 = vmatprep.subr.mxu0 0.0
      %1401 = vmatpush1.msra.mxu0 0.0
      %1402 = vmatprep.subr.mxu0 0.0
      %1403 = vmatpush1.msra.mxu0 0.0
      %1404 = vmatprep.subr.mxu0 0.0
      %1405 = vmatpush1.msra.mxu0 0.0
      %1406 = vmatprep.subr.mxu0 0.0
      %1407 = vmatpush1.msra.mxu0 0.0
      %1408 = vmatprep.subr.mxu0 0.0
      %1409 = vmatpush1.msra.mxu0 0.0
      %1410 = vmatprep.subr.mxu0 0.0
      %1411 = vmatpush1.msra.mxu0 0.0
      %1412 = vmatprep.subr.mxu0 0.0
      %1413 = vmatpush1.msra.mxu0 0.0
      %1414 = vmatprep.subr.mxu0 0.0
      %1415 = vmatpush1.msra.mxu0 0.0
      %1416 = vmatprep.subr.mxu0 0.0
      %1417 = vmatpush1.msra.mxu0 0.0
      %1418 = vmatprep.subr.mxu0 0.0
      %1419 = vmatpush1.msra.mxu0 0.0
      %1420 = vmatprep.subr.mxu0 0.0
      %1421 = vmatpush1.msra.mxu0 0.0
      %1422 = vmatprep.subr.mxu0 0.0
      %1423 = vmatpush1.msra.mxu0 0.0
      %1424 = vmatprep.subr.mxu0 0.0
      %1425 = vmatpush1.msra.mxu0 0.0
      %1426 = vmatprep.subr.mxu0 0.0
      %1427 = vmatpush1.msra.mxu0 0.0
      %1428 = vmatprep.subr.mxu0 0.0
      %1429 = vmatpush1.msra.mxu0 0.0
      %1430 = vmatprep.subr.mxu0 0.0
      %1431 = vmatpush1.msra.mxu0 0.0
      %1432 = vmatprep.subr.mxu0 0.0
      %1433 = vmatpush1.msra.mxu0 0.0
      %1434 = vmatprep.subr.mxu0 0.0
      %1435 = vmatpush1.msra.mxu0 0.0
      %1436 = vmatprep.subr.mxu0 0.0
      %1437 = vmatpush1.msra.mxu0 0.0
      %1438 = vmatprep.subr.mxu0 0.0
      %1439 = vmatpush1.msra.mxu0 0.0
      %1440 = vmatprep.subr.mxu0 0.0
      %1441 = vmatpush1.msra.mxu0 0.0
      %1442 = vmatprep.subr.mxu0 0.0
      %1443 = vmatpush1.msra.mxu0 0.0
      %1444 = vmatprep.subr.mxu0 0.0
      %1445 = vmatpush1.msra.mxu0 0.0
      %1446 = vmatprep.subr.mxu0 0.0
      %1447 = vmatpush1.msra.mxu0 0.0
      %1448 = vmatprep.mubr.f32.mxu0 0.0
      %1449 = vmatmul.mubr.f32.gmra.mrb[0].mxu0 %v1376
      %v1450 = vpop.f32.mrb[0].mxu0
      %v1451 = vadd.f32 0.0, %v1450
      %v1452 = vpop.f32.mrb[0].mxu0
      %v1453 = vadd.f32 0.0, %v1452
      %1454 = vdwg.mxu0
      %1455 = vmatprep.subr.mxu0 0.0
      %1456 = vmatpush1.msra.mxu0 %v1382
      %1457 = vmatprep.subr.mxu0 0.0
      %1458 = vmatpush1.msra.mxu0 0.0
      %1459 = vmatprep.subr.mxu0 0.0
      %1460 = vmatpush1.msra.mxu0 0.0
      %1461 = vmatprep.subr.mxu0 0.0
      %1462 = vmatpush1.msra.mxu0 0.0
      %1463 = vmatprep.subr.mxu0 0.0
      %1464 = vmatpush1.msra.mxu0 0.0
      %1465 = vmatprep.subr.mxu0 0.0
      %1466 = vmatpush1.msra.mxu0 0.0
      %1467 = vmatprep.subr.mxu0 0.0
      %1468 = vmatpush1.msra.mxu0 0.0
      %1469 = vmatprep.subr.mxu0 0.0
      %1470 = vmatpush1.msra.mxu0 0.0
      %1471 = vmatprep.subr.mxu0 0.0
      %1472 = vmatpush1.msra.mxu0 0.0
      %1473 = vmatprep.subr.mxu0 0.0
      %1474 = vmatpush1.msra.mxu0 0.0
      %1475 = vmatprep.subr.mxu0 0.0
      %1476 = vmatpush1.msra.mxu0 0.0
      %1477 = vmatprep.subr.mxu0 0.0
      %1478 = vmatpush1.msra.mxu0 0.0
      %1479 = vmatprep.subr.mxu0 0.0
      %1480 = vmatpush1.msra.mxu0 0.0
      %1481 = vmatprep.subr.mxu0 0.0
      %1482 = vmatpush1.msra.mxu0 0.0
      %1483 = vmatprep.subr.mxu0 0.0
      %1484 = vmatpush1.msra.mxu0 0.0
      %1485 = vmatprep.subr.mxu0 0.0
      %1486 = vmatpush1.msra.mxu0 0.0
      %1487 = vmatprep.subr.mxu0 0.0
      %1488 = vmatpush1.msra.mxu0 0.0
      %1489 = vmatprep.subr.mxu0 0.0
      %1490 = vmatpush1.msra.mxu0 0.0
      %1491 = vmatprep.subr.mxu0 0.0
      %1492 = vmatpush1.msra.mxu0 0.0
      %1493 = vmatprep.subr.mxu0 0.0
      %1494 = vmatpush1.msra.mxu0 0.0
      %1495 = vmatprep.subr.mxu0 0.0
      %1496 = vmatpush1.msra.mxu0 0.0
      %1497 = vmatprep.subr.mxu0 0.0
      %1498 = vmatpush1.msra.mxu0 0.0
      %1499 = vmatprep.subr.mxu0 0.0
      %1500 = vmatpush1.msra.mxu0 0.0
      %1501 = vmatprep.subr.mxu0 0.0
      %1502 = vmatpush1.msra.mxu0 0.0
      %1503 = vmatprep.subr.mxu0 0.0
      %1504 = vmatpush1.msra.mxu0 0.0
      %1505 = vmatprep.subr.mxu0 0.0
      %1506 = vmatpush1.msra.mxu0 0.0
      %1507 = vmatprep.subr.mxu0 0.0
      %1508 = vmatpush1.msra.mxu0 0.0
      %1509 = vmatprep.subr.mxu0 0.0
      %1510 = vmatpush1.msra.mxu0 0.0
      %1511 = vmatprep.subr.mxu0 0.0
      %1512 = vmatpush1.msra.mxu0 0.0
      %1513 = vmatprep.subr.mxu0 0.0
      %1514 = vmatpush1.msra.mxu0 0.0
      %1515 = vmatprep.subr.mxu0 0.0
      %1516 = vmatpush1.msra.mxu0 0.0
      %1517 = vmatprep.subr.mxu0 0.0
      %1518 = vmatpush1.msra.mxu0 0.0
      %1519 = vmatprep.mubr.f32.mxu0 0.0
      %1520 = vmatmul.mubr.f32.gmra.mrb[0].mxu0 %v1376
      %v1521 = vpop.f32.mrb[0].mxu0
      %v1522 = vadd.f32 0.0, %v1521
      %v1523 = vpop.f32.mrb[0].mxu0
      %1524 = vdwg.mxu0
      %v1525 = vadd.f32 %v1361, %v1451
      %v1526 = vadd.f32 %v1362, %v1453
      %v1527 = vadd.f32 %v1363, %v1522
      %s1528 = scalar_lea.vmem %s1, 64
      %v1529 = vld [vmem:[%s1528] sm:$0xff]
      %1530 = vrot.lane.b32.xlu0 %v225, 90
      %v1531 = vpop.permute.xlu0 %1530
      %1532 = vrot.lane.b32.xlu0 %v232, 90
      %v1533 = vpop.permute.xlu0 %1532
      %1534 = vrot.lane.b32.xlu0 %v226, 90
      %v1535 = vpop.permute.xlu0 %1534
      %vm1536 = vcmask 736256
      %v1537 = vsel %vm1536, %v1531, %v1533
      %v1538 = vsel %vm1536, %v1533, %v1535
      %v1540 = vsel %vm242, %v1529, 0
      %v1542 = vsel %vm246, %v1537, 0
      %v1544 = vsel %vm246, %v1538, 0
      %v1546 = vsel %vm246, %v1535, 0
      %1548 = vmatprep.subr.mxu0 %v1544
      %1549 = vmatpush1.msra.mxu0 %v1542
      %1550 = vmatprep.subr.mxu0 0.0
      %1551 = vmatpush1.msra.mxu0 0.0
      %1552 = vmatprep.subr.mxu0 0.0
      %1553 = vmatpush1.msra.mxu0 0.0
      %1554 = vmatprep.subr.mxu0 0.0
      %1555 = vmatpush1.msra.mxu0 0.0
      %1556 = vmatprep.subr.mxu0 0.0
      %1557 = vmatpush1.msra.mxu0 0.0
      %1558 = vmatprep.subr.mxu0 0.0
      %1559 = vmatpush1.msra.mxu0 0.0
      %1560 = vmatprep.subr.mxu0 0.0
      %1561 = vmatpush1.msra.mxu0 0.0
      %1562 = vmatprep.subr.mxu0 0.0
      %1563 = vmatpush1.msra.mxu0 0.0
      %1564 = vmatprep.subr.mxu0 0.0
      %1565 = vmatpush1.msra.mxu0 0.0
      %1566 = vmatprep.subr.mxu0 0.0
      %1567 = vmatpush1.msra.mxu0 0.0
      %1568 = vmatprep.subr.mxu0 0.0
      %1569 = vmatpush1.msra.mxu0 0.0
      %1570 = vmatprep.subr.mxu0 0.0
      %1571 = vmatpush1.msra.mxu0 0.0
      %1572 = vmatprep.subr.mxu0 0.0
      %1573 = vmatpush1.msra.mxu0 0.0
      %1574 = vmatprep.subr.mxu0 0.0
      %1575 = vmatpush1.msra.mxu0 0.0
      %1576 = vmatprep.subr.mxu0 0.0
      %1577 = vmatpush1.msra.mxu0 0.0
      %1578 = vmatprep.subr.mxu0 0.0
      %1579 = vmatpush1.msra.mxu0 0.0
      %1580 = vmatprep.subr.mxu0 0.0
      %1581 = vmatpush1.msra.mxu0 0.0
      %1582 = vmatprep.subr.mxu0 0.0
      %1583 = vmatpush1.msra.mxu0 0.0
      %1584 = vmatprep.subr.mxu0 0.0
      %1585 = vmatpush1.msra.mxu0 0.0
      %1586 = vmatprep.subr.mxu0 0.0
      %1587 = vmatpush1.msra.mxu0 0.0
      %1588 = vmatprep.subr.mxu0 0.0
      %1589 = vmatpush1.msra.mxu0 0.0
      %1590 = vmatprep.subr.mxu0 0.0
      %1591 = vmatpush1.msra.mxu0 0.0
      %1592 = vmatprep.subr.mxu0 0.0
      %1593 = vmatpush1.msra.mxu0 0.0
      %1594 = vmatprep.subr.mxu0 0.0
      %1595 = vmatpush1.msra.mxu0 0.0
      %1596 = vmatprep.subr.mxu0 0.0
      %1597 = vmatpush1.msra.mxu0 0.0
      %1598 = vmatprep.subr.mxu0 0.0
      %1599 = vmatpush1.msra.mxu0 0.0
      %1600 = vmatprep.subr.mxu0 0.0
      %1601 = vmatpush1.msra.mxu0 0.0
      %1602 = vmatprep.subr.mxu0 0.0
      %1603 = vmatpush1.msra.mxu0 0.0
      %1604 = vmatprep.subr.mxu0 0.0
      %1605 = vmatpush1.msra.mxu0 0.0
      %1606 = vmatprep.subr.mxu0 0.0
      %1607 = vmatpush1.msra.mxu0 0.0
      %1608 = vmatprep.subr.mxu0 0.0
      %1609 = vmatpush1.msra.mxu0 0.0
      %1610 = vmatprep.subr.mxu0 0.0
      %1611 = vmatpush1.msra.mxu0 0.0
      %1612 = vmatprep.mubr.f32.mxu0 0.0
      %1613 = vmatmul.mubr.f32.gmra.mrb[0].mxu0 %v1540
      %v1614 = vpop.f32.mrb[0].mxu0
      %v1615 = vadd.f32 0.0, %v1614
      %v1616 = vpop.f32.mrb[0].mxu0
      %v1617 = vadd.f32 0.0, %v1616
      %1618 = vdwg.mxu0
      %1619 = vmatprep.subr.mxu0 0.0
      %1620 = vmatpush1.msra.mxu0 %v1546
      %1621 = vmatprep.subr.mxu0 0.0
      %1622 = vmatpush1.msra.mxu0 0.0
      %1623 = vmatprep.subr.mxu0 0.0
      %1624 = vmatpush1.msra.mxu0 0.0
      %1625 = vmatprep.subr.mxu0 0.0
      %1626 = vmatpush1.msra.mxu0 0.0
      %1627 = vmatprep.subr.mxu0 0.0
      %1628 = vmatpush1.msra.mxu0 0.0
      %1629 = vmatprep.subr.mxu0 0.0
      %1630 = vmatpush1.msra.mxu0 0.0
      %1631 = vmatprep.subr.mxu0 0.0
      %1632 = vmatpush1.msra.mxu0 0.0
      %1633 = vmatprep.subr.mxu0 0.0
      %1634 = vmatpush1.msra.mxu0 0.0
      %1635 = vmatprep.subr.mxu0 0.0
      %1636 = vmatpush1.msra.mxu0 0.0
      %1637 = vmatprep.subr.mxu0 0.0
      %1638 = vmatpush1.msra.mxu0 0.0
      %1639 = vmatprep.subr.mxu0 0.0
      %1640 = vmatpush1.msra.mxu0 0.0
      %1641 = vmatprep.subr.mxu0 0.0
      %1642 = vmatpush1.msra.mxu0 0.0
      %1643 = vmatprep.subr.mxu0 0.0
      %1644 = vmatpush1.msra.mxu0 0.0
      %1645 = vmatprep.subr.mxu0 0.0
      %1646 = vmatpush1.msra.mxu0 0.0
      %1647 = vmatprep.subr.mxu0 0.0
      %1648 = vmatpush1.msra.mxu0 0.0
      %1649 = vmatprep.subr.mxu0 0.0
      %1650 = vmatpush1.msra.mxu0 0.0
      %1651 = vmatprep.subr.mxu0 0.0
      %1652 = vmatpush1.msra.mxu0 0.0
      %1653 = vmatprep.subr.mxu0 0.0
      %1654 = vmatpush1.msra.mxu0 0.0
      %1655 = vmatprep.subr.mxu0 0.0
      %1656 = vmatpush1.msra.mxu0 0.0
      %1657 = vmatprep.subr.mxu0 0.0
      %1658 = vmatpush1.msra.mxu0 0.0
      %1659 = vmatprep.subr.mxu0 0.0
      %1660 = vmatpush1.msra.mxu0 0.0
      %1661 = vmatprep.subr.mxu0 0.0
      %1662 = vmatpush1.msra.mxu0 0.0
      %1663 = vmatprep.subr.mxu0 0.0
      %1664 = vmatpush1.msra.mxu0 0.0
      %1665 = vmatprep.subr.mxu0 0.0
      %1666 = vmatpush1.msra.mxu0 0.0
      %1667 = vmatprep.subr.mxu0 0.0
      %1668 = vmatpush1.msra.mxu0 0.0
      %1669 = vmatprep.subr.mxu0 0.0
      %1670 = vmatpush1.msra.mxu0 0.0
      %1671 = vmatprep.subr.mxu0 0.0
      %1672 = vmatpush1.msra.mxu0 0.0
      %1673 = vmatprep.subr.mxu0 0.0
      %1674 = vmatpush1.msra.mxu0 0.0
      %1675 = vmatprep.subr.mxu0 0.0
      %1676 = vmatpush1.msra.mxu0 0.0
      %1677 = vmatprep.subr.mxu0 0.0
      %1678 = vmatpush1.msra.mxu0 0.0
      %1679 = vmatprep.subr.mxu0 0.0
      %1680 = vmatpush1.msra.mxu0 0.0
      %1681 = vmatprep.subr.mxu0 0.0
      %1682 = vmatpush1.msra.mxu0 0.0
      %1683 = vmatprep.mubr.f32.mxu0 0.0
      %1684 = vmatmul.mubr.f32.gmra.mrb[0].mxu0 %v1540
      %v1685 = vpop.f32.mrb[0].mxu0
      %v1686 = vadd.f32 0.0, %v1685
      %v1687 = vpop.f32.mrb[0].mxu0
      %1688 = vdwg.mxu0
      %v1689 = vadd.f32 %v1525, %v1615
      %v1690 = vadd.f32 %v1526, %v1617
      %v1691 = vadd.f32 %v1527, %v1686
      %v1692 = vld [vmem:[%s2] sm:$0xff]
      %1694 = vset.pattern.permute.xlu0 0
      %1695 = vperm.xlu0 %1694, %v1692
      %v1696 = vpop.permute.xlu0 %1695
      %v1698 = vadd.f32 %v1689, %v1696
      %v1699 = vadd.f32 %v1690, %v1696
      %v1700 = vadd.f32 %v1691, %v1696
      %v1701 = vmul.f32 %v1698, 0.5
      %v1702 = vmul.f32 %v1699, 0.5
      %v1703 = vmul.f32 %v1700, 0.5
      %v1704 = vmul.f32 %v1698, 0.70710677
      %v1705 = vmul.f32 %v1699, 0.70710677
      %v1706 = vmul.f32 %v1700, 0.70710677
      %v1707 = vand.u32 2147483647, %v1704
      %v1708 = vand.u32 2147483647, %v1705
      %v1709 = vand.u32 2147483647, %v1706
      %v1710 = vmul.f32 %v1707, 0.3275911
      %v1711 = vmul.f32 %v1708, 0.3275911
      %v1712 = vmul.f32 %v1709, 0.3275911
      %v1713 = vadd.f32 %v1710, 1.0
      %v1714 = vadd.f32 %v1711, 1.0
      %v1715 = vadd.f32 %v1712, 1.0
      %v1716 = vrcp.pop %v1713
      %v1717 = vmul.f32 1.0, %v1716
      %v1718 = vrcp.pop %v1714
      %v1719 = vmul.f32 1.0, %v1718
      %v1720 = vrcp.pop %v1715
      %v1721 = vmul.f32 1.0, %v1720
      %v1722 = vmul.f32 %v1717, 1.0614054
      %v1723 = vmul.f32 %v1719, 1.0614054
      %v1724 = vmul.f32 %v1721, 1.0614054
      %v1725 = vadd.f32 %v1722, -1.4531521
      %v1726 = vadd.f32 %v1723, -1.4531521
      %v1727 = vadd.f32 %v1724, -1.4531521
      %v1728 = vmul.f32 %v1725, %v1717
      %v1729 = vmul.f32 %v1726, %v1719
      %v1730 = vmul.f32 %v1727, %v1721
      %v1731 = vadd.f32 %v1728, 1.4214138
      %v1732 = vadd.f32 %v1729, 1.4214138
      %v1733 = vadd.f32 %v1730, 1.4214138
      %v1734 = vmul.f32 %v1731, %v1717
      %v1735 = vmul.f32 %v1732, %v1719
      %v1736 = vmul.f32 %v1733, %v1721
      %v1737 = vadd.f32 %v1734, -0.28449672
      %v1738 = vadd.f32 %v1735, -0.28449672
      %v1739 = vadd.f32 %v1736, -0.28449672
      %v1740 = vmul.f32 %v1737, %v1717
      %v1741 = vmul.f32 %v1738, %v1719
      %v1742 = vmul.f32 %v1739, %v1721
      %v1743 = vadd.f32 %v1740, 0.2548296
      %v1744 = vadd.f32 %v1741, 0.2548296
      %v1745 = vadd.f32 %v1742, 0.2548296
      %v1746 = vmul.f32 %v1743, %v1717
      %v1747 = vmul.f32 %v1744, %v1719
      %v1748 = vmul.f32 %v1745, %v1721
      %v1749 = vsub.f32 0.0, %v1707
      %v1750 = vsub.f32 0.0, %v1708
      %v1751 = vsub.f32 0.0, %v1709
      %v1752 = vmul.f32 %v1749, %v1707
      %v1753 = vmul.f32 %v1750, %v1708
      %v1754 = vmul.f32 %v1751, %v1709
      %v1755 = vmul.f32 %v1752, 1.442695
      %v1756 = vpow.pop %v1755
      %v1757 = vmul.f32 %v1753, 1.442695
      %v1758 = vpow.pop %v1757
      %v1759 = vmul.f32 %v1754, 1.442695
      %v1760 = vpow.pop %v1759
      %v1761 = vmul.f32 %v1746, %v1756
      %v1762 = vmul.f32 %v1747, %v1758
      %v1763 = vmul.f32 %v1748, %v1760
      %v1764 = vsub.f32 1.0, %v1761
      %v1765 = vsub.f32 1.0, %v1762
      %v1766 = vsub.f32 1.0, %v1763
      %vm1767 = vcmp.ge.f32.partialorder %v1704, 0.0
      %vm1768 = vcmp.ge.f32.partialorder %v1705, 0.0
      %vm1769 = vcmp.ge.f32.partialorder %v1706, 0.0
      %v1770 = vsub.f32 0.0, %v1764
      %v1771 = vsub.f32 0.0, %v1765
      %v1772 = vsub.f32 0.0, %v1766
      %v1773 = vsel %vm1767, %v1764, %v1770
      %v1774 = vsel %vm1768, %v1765, %v1771
      %v1775 = vsel %vm1769, %v1766, %v1772
      %v1776 = vadd.f32 %v1773, 1.0
      %v1777 = vadd.f32 %v1774, 1.0
      %v1778 = vadd.f32 %v1775, 1.0
      %v1779 = vmul.f32 %v1701, %v1776
      %v1780 = vmul.f32 %v1702, %v1777
      %v1781 = vmul.f32 %v1703, %v1778
      %v1785 = vrot.slane %v1779, 4
      %v1786 = vrot.slane %v1780, 4
      %v1787 = vrot.slane %v1781, 4
      %v1791 = vmul.f32 %v1698, %v1785
      %v1792 = vmul.f32 %v1699, %v1786
      %v1793 = vmul.f32 %v1700, %v1787
      %v1794 = vlaneseq
      %v1795 = vand.u32 %v1794, 127
      %v1796 = vadd.s32 %v1795, 128
      %v1797 = vadd.s32 %v1795, 256
      %vm1798 = vcmp.lt.s32.totalorder %v1795, 0
      %v1799 = vsub.s32 0, %v1795
      %v1800 = vsel %vm1798, %v1799, %v1795
      %v1801 = vmul.u32.u64.compose %v1800, 3817748708
      %v1802 = vextract.low.u32 %v1801
      %v1803 = vextract.high.u32 %v1801
      %v1804 = vshrl.u32 %v1803, 4
      %v1805 = vmul.u32 %v1804, 18
      %v1806 = vsub.s32 %v1800, %v1805
      %v1807 = vsub.s32 0, %v1806
      %v1808 = vsel %vm1798, %v1807, %v1806
      %vm1809 = vcmp.lt.s32.totalorder %v1796, 0
      %v1810 = vsub.s32 0, %v1796
      %v1811 = vsel %vm1809, %v1810, %v1796
      %v1812 = vmul.u32.u64.compose %v1811, 3817748708
      %v1813 = vextract.low.u32 %v1812
      %v1814 = vextract.high.u32 %v1812
      %v1815 = vshrl.u32 %v1814, 4
      %v1816 = vmul.u32 %v1815, 18
      %v1817 = vsub.s32 %v1811, %v1816
      %v1818 = vsub.s32 0, %v1817
      %v1819 = vsel %vm1809, %v1818, %v1817
      %vm1820 = vcmp.lt.s32.totalorder %v1797, 0
      %v1821 = vsub.s32 0, %v1797
      %v1822 = vsel %vm1820, %v1821, %v1797
      %v1823 = vmul.u32.u64.compose %v1822, 3817748708
      %v1824 = vextract.low.u32 %v1823
      %v1825 = vextract.high.u32 %v1823
      %v1826 = vshrl.u32 %v1825, 4
      %v1827 = vmul.u32 %v1826, 18
      %v1828 = vsub.s32 %v1822, %v1827
      %v1829 = vsub.s32 0, %v1828
      %v1830 = vsel %vm1820, %v1829, %v1828
      %vm1831 = vcmp.ne.s32.totalorder %v1808, 0
      %vm1832 = vcmp.ne.s32.totalorder %v1819, 0
      %vm1833 = vcmp.ne.s32.totalorder %v1830, 0
      %vm1834 = vcmp.lt.s32.totalorder %v1808, 0
      %vm1835 = vcmp.lt.s32.totalorder %v1819, 0
      %vm1836 = vcmp.lt.s32.totalorder %v1830, 0
      %vm1837 = vmand %vm1834, %vm1831
      %vm1838 = vmand %vm1835, %vm1832
      %vm1839 = vmand %vm1836, %vm1833
      %v1840 = vadd.s32 %v1808, 18
      %v1841 = vadd.s32 %v1819, 18
      %v1842 = vadd.s32 %v1830, 18
      %v1843 = vsel %vm1837, %v1840, %v1808
      %v1844 = vsel %vm1838, %v1841, %v1819
      %v1845 = vsel %vm1839, %v1842, %v1830
      %vm1846 = vcmp.lt.s32.totalorder %v1843, 16
      %vm1847 = vcmp.lt.s32.totalorder %v1844, 16
      %vm1848 = vcmp.lt.s32.totalorder %v1845, 16
      %v1849 = vsel %vm1846, 1, 0
      %v1850 = vsel %vm1847, 1, 0
      %v1851 = vsel %vm1848, 1, 0
      %vm1852 = vcmp.eq.s32.totalorder %v1849, 1
      %vm1853 = vcmp.eq.s32.totalorder %v1850, 1
      %vm1854 = vcmp.eq.s32.totalorder %v1851, 1
      %v1855 = vsel %vm1852, %v1791, 0.0
      %v1856 = vsel %vm1853, %v1792, 0.0
      %v1857 = vsel %vm1854, %v1793, 0.0
      %v1858 = vsel %vm246, %v1855, 0.0
      %v1859 = vsel %vm246, %v1856, 0.0
      %v1860 = vadd.f32 %v1858, %v1859
      %vm1861 = vcmask 257024
      %v1862 = vsel %vm1861, %v1857, 0.0
      %v1863 = vadd.f32 %v1860, %v1862
      %1864 = vadd.xlane.f32.xlu0 %v1863
      %v1865 = vpop.xlane.xlu0 %1864
      %v1866 = vmul.f32 %v1791, %v1791
      %v1867 = vmul.f32 %v1792, %v1792
      %v1868 = vmul.f32 %v1793, %v1793
      %v1869 = vsel %vm1852, %v1866, 0.0
      %v1870 = vsel %vm1853, %v1867, 0.0
      %v1871 = vsel %vm1854, %v1868, 0.0
      %v1872 = vsel %vm246, %v1869, 0.0
      %v1873 = vsel %vm246, %v1870, 0.0
      %v1874 = vadd.f32 %v1872, %v1873
      %v1875 = vsel %vm1861, %v1871, 0.0
      %v1876 = vadd.f32 %v1874, %v1875
      %1877 = vadd.xlane.f32.xlu0 %v1876
      %v1878 = vpop.xlane.xlu0 %1877
      %v1879 = vrcp.pop 256.0
      %v1880 = vmul.f32 %v1865, %v1879
      %v1881 = vmul.f32 %v1878, %v1879
      %v1882 = vmul.f32 %v1880, %v1880
      %v1883 = vsub.f32 %v1881, %v1882
      %v1884 = vsub.f32 %v1791, %v1880
      %v1885 = vsub.f32 %v1792, %v1880
      %v1886 = vsub.f32 %v1793, %v1880
      %v1887 = vadd.f32 %v1883, 1e-05
      %v1888 = vrsqrt.pop %v1887
      %v1889 = vmul.f32 %v1884, %v1888
      %v1890 = vmul.f32 %v1885, %v1888
      %v1891 = vmul.f32 %v1886, %v1888
      %v1892 = vld [vmem:[%s3] sm:$0xf]
      %v1893 = vld [vmem:[%s4] sm:$0xf]
      %1895 = vset.pattern.permute.xlu0 0
      %1896 = vperm.xlu0 %1895, %v1893
      %v1897 = vpop.permute.xlu0 %1896
      %v1900 = vsel %vm242, %v1892, 0
      %v1903 = vsel %vm246, %v1889, 0
      %v1906 = vsel %vm246, %v1890, 0
      %v1909 = vsel %vm246, %v1891, 0
      %1911 = vmatprep.subr.mxu0 %v1906
      %1912 = vmatpush1.msra.mxu0 %v1903
      %1913 = vmatprep.subr.mxu0 0.0
      %1914 = vmatpush1.msra.mxu0 0.0
      %1915 = vmatprep.subr.mxu0 0.0
      %1916 = vmatpush1.msra.mxu0 0.0
      %1917 = vmatprep.subr.mxu0 0.0
      %1918 = vmatpush1.msra.mxu0 0.0
      %1919 = vmatprep.subr.mxu0 0.0
      %1920 = vmatpush1.msra.mxu0 0.0
      %1921 = vmatprep.subr.mxu0 0.0
      %1922 = vmatpush1.msra.mxu0 0.0
      %1923 = vmatprep.subr.mxu0 0.0
      %1924 = vmatpush1.msra.mxu0 0.0
      %1925 = vmatprep.subr.mxu0 0.0
      %1926 = vmatpush1.msra.mxu0 0.0
      %1927 = vmatprep.subr.mxu0 0.0
      %1928 = vmatpush1.msra.mxu0 0.0
      %1929 = vmatprep.subr.mxu0 0.0
      %1930 = vmatpush1.msra.mxu0 0.0
      %1931 = vmatprep.subr.mxu0 0.0
      %1932 = vmatpush1.msra.mxu0 0.0
      %1933 = vmatprep.subr.mxu0 0.0
      %1934 = vmatpush1.msra.mxu0 0.0
      %1935 = vmatprep.subr.mxu0 0.0
      %1936 = vmatpush1.msra.mxu0 0.0
      %1937 = vmatprep.subr.mxu0 0.0
      %1938 = vmatpush1.msra.mxu0 0.0
      %1939 = vmatprep.subr.mxu0 0.0
      %1940 = vmatpush1.msra.mxu0 0.0
      %1941 = vmatprep.subr.mxu0 0.0
      %1942 = vmatpush1.msra.mxu0 0.0
      %1943 = vmatprep.subr.mxu0 0.0
      %1944 = vmatpush1.msra.mxu0 0.0
      %1945 = vmatprep.subr.mxu0 0.0
      %1946 = vmatpush1.msra.mxu0 0.0
      %1947 = vmatprep.subr.mxu0 0.0
      %1948 = vmatpush1.msra.mxu0 0.0
      %1949 = vmatprep.subr.mxu0 0.0
      %1950 = vmatpush1.msra.mxu0 0.0
      %1951 = vmatprep.subr.mxu0 0.0
      %1952 = vmatpush1.msra.mxu0 0.0
      %1953 = vmatprep.subr.mxu0 0.0
      %1954 = vmatpush1.msra.mxu0 0.0
      %1955 = vmatprep.subr.mxu0 0.0
      %1956 = vmatpush1.msra.mxu0 0.0
      %1957 = vmatprep.subr.mxu0 0.0
      %1958 = vmatpush1.msra.mxu0 0.0
      %1959 = vmatprep.subr.mxu0 0.0
      %1960 = vmatpush1.msra.mxu0 0.0
      %1961 = vmatprep.subr.mxu0 0.0
      %1962 = vmatpush1.msra.mxu0 0.0
      %1963 = vmatprep.subr.mxu0 0.0
      %1964 = vmatpush1.msra.mxu0 0.0
      %1965 = vmatprep.subr.mxu0 0.0
      %1966 = vmatpush1.msra.mxu0 0.0
      %1967 = vmatprep.subr.mxu0 0.0
      %1968 = vmatpush1.msra.mxu0 0.0
      %1969 = vmatprep.subr.mxu0 0.0
      %1970 = vmatpush1.msra.mxu0 0.0
      %1971 = vmatprep.subr.mxu0 0.0
      %1972 = vmatpush1.msra.mxu0 0.0
      %1973 = vmatprep.subr.mxu0 0.0
      %1974 = vmatpush1.msra.mxu0 0.0
      %1975 = vmatprep.mubr.f32.mxu0 0.0
      %1976 = vmatmul.mubr.f32.gmra.mrb[0].mxu0 %v1900
      %v1977 = vpop.f32.mrb[0].mxu0
      %v1978 = vadd.f32 %v1897, %v1977
      %v1979 = vpop.f32.mrb[0].mxu0
      %v1980 = vadd.f32 %v1897, %v1979
      %1981 = vdwg.mxu0
      %1982 = vmatprep.subr.mxu0 0.0
      %1983 = vmatpush1.msra.mxu0 %v1909
      %1984 = vmatprep.subr.mxu0 0.0
      %1985 = vmatpush1.msra.mxu0 0.0
      %1986 = vmatprep.subr.mxu0 0.0
      %1987 = vmatpush1.msra.mxu0 0.0
      %1988 = vmatprep.subr.mxu0 0.0
      %1989 = vmatpush1.msra.mxu0 0.0
      %1990 = vmatprep.subr.mxu0 0.0
      %1991 = vmatpush1.msra.mxu0 0.0
      %1992 = vmatprep.subr.mxu0 0.0
      %1993 = vmatpush1.msra.mxu0 0.0
      %1994 = vmatprep.subr.mxu0 0.0
      %1995 = vmatpush1.msra.mxu0 0.0
      %1996 = vmatprep.subr.mxu0 0.0
      %1997 = vmatpush1.msra.mxu0 0.0
      %1998 = vmatprep.subr.mxu0 0.0
      %1999 = vmatpush1.msra.mxu0 0.0
      %2000 = vmatprep.subr.mxu0 0.0
      %2001 = vmatpush1.msra.mxu0 0.0
      %2002 = vmatprep.subr.mxu0 0.0
      %2003 = vmatpush1.msra.mxu0 0.0
      %2004 = vmatprep.subr.mxu0 0.0
      %2005 = vmatpush1.msra.mxu0 0.0
      %2006 = vmatprep.subr.mxu0 0.0
      %2007 = vmatpush1.msra.mxu0 0.0
      %2008 = vmatprep.subr.mxu0 0.0
      %2009 = vmatpush1.msra.mxu0 0.0
      %2010 = vmatprep.subr.mxu0 0.0
      %2011 = vmatpush1.msra.mxu0 0.0
      %2012 = vmatprep.subr.mxu0 0.0
      %2013 = vmatpush1.msra.mxu0 0.0
      %2014 = vmatprep.subr.mxu0 0.0
      %2015 = vmatpush1.msra.mxu0 0.0
      %2016 = vmatprep.subr.mxu0 0.0
      %2017 = vmatpush1.msra.mxu0 0.0
      %2018 = vmatprep.subr.mxu0 0.0
      %2019 = vmatpush1.msra.mxu0 0.0
      %2020 = vmatprep.subr.mxu0 0.0
      %2021 = vmatpush1.msra.mxu0 0.0
      %2022 = vmatprep.subr.mxu0 0.0
      %2023 = vmatpush1.msra.mxu0 0.0
      %2024 = vmatprep.subr.mxu0 0.0
      %2025 = vmatpush1.msra.mxu0 0.0
      %2026 = vmatprep.subr.mxu0 0.0
      %2027 = vmatpush1.msra.mxu0 0.0
      %2028 = vmatprep.subr.mxu0 0.0
      %2029 = vmatpush1.msra.mxu0 0.0
      %2030 = vmatprep.subr.mxu0 0.0
      %2031 = vmatpush1.msra.mxu0 0.0
      %2032 = vmatprep.subr.mxu0 0.0
      %2033 = vmatpush1.msra.mxu0 0.0
      %2034 = vmatprep.subr.mxu0 0.0
      %2035 = vmatpush1.msra.mxu0 0.0
      %2036 = vmatprep.subr.mxu0 0.0
      %2037 = vmatpush1.msra.mxu0 0.0
      %2038 = vmatprep.subr.mxu0 0.0
      %2039 = vmatpush1.msra.mxu0 0.0
      %2040 = vmatprep.subr.mxu0 0.0
      %2041 = vmatpush1.msra.mxu0 0.0
      %2042 = vmatprep.subr.mxu0 0.0
      %2043 = vmatpush1.msra.mxu0 0.0
      %2044 = vmatprep.subr.mxu0 0.0
      %2045 = vmatpush1.msra.mxu0 0.0
      %2046 = vmatprep.mubr.f32.mxu0 0.0
      %2047 = vmatmul.mubr.f32.gmra.mrb[0].mxu0 %v1900
      %v2048 = vpop.f32.mrb[0].mxu0
      %v2049 = vadd.f32 %v1897, %v2048
      %v2050 = vpop.f32.mrb[0].mxu0
      %2051 = vdwg.mxu0
      %v2055 = vadd.f32 %v1978, %v881
      %v2056 = vadd.f32 %v1980, %v882
      %v2057 = vadd.f32 %v2049, %v879
      %v2060 = vcombine.low %v2055, %v2056
      %2062 = vst [vmem:[%s224] sm:$0xff] %v2060
      %2063 = vst.msk [vmem:[%s224 + $0x8] sm:$0xf] %vm1861, %v2057
      %p2064 = scmp.lt.s32.totalorder %s16, 1
      %s2065 = scalar_select %p2064, %s16, 1
      %s2066 = smul.addr %s2065, 3
      %s2067 = smul.addr %s2066, 4
      %s2068 = scalar_lea.vmem %s5, %s2067
      // Predicated region
      $region41: #{convblock_forward.1} parent=39 // pred_check
        %p2069 = pneg %p144
      $region42: #{convblock_forward.1} parent=39 // pred_check_branch
        %2071 = sbr.rel (%p2069) target = $region44
      $region43: #{convblock_forward.1} parent=39 // pred_region
        _
      $region44: #{convblock_forward.1} parent=39 // pred_fallthru
        _
    $region40: #{convblock_forward.1} parent=5 // pred_fallthru
      _
    %p2072 = scmp.le.s32.totalorder 2, %s11
    // Predicated region
    $region45: #{convblock_forward.1} parent=5 // pred_check
      %p2073 = pneg %p2072
    $region46: #{convblock_forward.1} parent=5 // pred_check_branch
      %2075 = sbr.rel (%p2073) target = $region48
    $region47: #{convblock_forward.1} parent=5 // pred_region
      %s2076 = ssub.s32 %s11, 2
      // Predicated region
      $region49: #{convblock_forward.1} parent=47 // pred_check
        %p2077 = pneg %p150
      $region50: #{convblock_forward.1} parent=47 // pred_check_branch
        %2079 = sbr.rel (%p2077) target = $region52
      $region51: #{convblock_forward.1} parent=47 // pred_region
        %p2080 = scmp.lt.s32.totalorder %s17, 1
        %s2081 = scalar_select %p2080, %s17, 1
        %s2082 = smul.addr %s2081, 3
        %s2083 = smul.addr %s2082, 4
        %s2084 = scalar_lea.vmem %s5, %s2083
      $region52: #{convblock_forward.1} parent=47 // pred_fallthru
        _
    $region48: #{convblock_forward.1} parent=5 // pred_fallthru
      _
  $region6: #{convblock_forward.1} parent=0 // loop_footer
    %s15 = sadd.s32 1, %s11
  $region7: #{convblock_forward.1} parent=0 // loop_footer_branch
    %10 = sbr.rel target = $region3
  $region8: #{convblock_forward.1} parent=0 // loop_exit
    _

</llo_original>
